<compile_context>
chip_gen: v6e
topology: v6e:2x2x1
jax: 0.10.0
libtpu: 0.0.40
codegen_flags: <defaults>
</compile_context>

<pallas_src>
import functools

import jax
import jax.numpy as jnp
from jax import lax
from jax.experimental import pallas as pl
from jax.experimental.pallas import tpu as pltpu

EPS = 1e-5

# Production tile target would be 512-1024 rows; 256 is used so the toy problem
# (M = N*H*W = 512 rows) still exercises a multi-step pipelined grid and the
# cross-step stats accumulator.  Per-step VMEM footprint stays tiny, well inside
# v7x's 64 MiB budget.
ROW_BLOCK = 256


def _row_block(m, target=ROW_BLOCK):
    """Largest multiple-of-8 divisor of m that is <= target (else the full m)."""
    blk = min(target, m)
    blk -= blk % 8
    while blk >= 8 and m % blk != 0:
        blk -= 8
    return blk if blk >= 8 else m


# ---------------------------------------------------------------------------
# Pallas kernels
# ---------------------------------------------------------------------------
def _conv_bias_stats_kernel(p_ref, w_ref, b_ref, y_ref, s1_ref, s2_ref):
    # (tm, K) @ (K, Cout) on the MXU, f32 accumulate; bias fused in the epilogue.
    y = jnp.dot(p_ref[...], w_ref[...], preferred_element_type=jnp.float32) + b_ref[...]
    y_ref[...] = y

    # BatchNorm batch-stat pass fused into the conv: per-channel sum and
    # sum-of-squares accumulated across the row grid (sequential axis).
    @pl.when(pl.program_id(0) == 0)
    def _():
        s1_ref[...] = jnp.zeros_like(s1_ref)
        s2_ref[...] = jnp.zeros_like(s2_ref)

    s1_ref[...] += jnp.sum(y, axis=0, keepdims=True)
    s2_ref[...] += jnp.sum(y * y, axis=0, keepdims=True)


def _bn_relu_pool_kernel(kk, wy_ref, wx_ref, mask_ref, sc_ref, sh_ref, oy_ref, ox_ref):
    # relu(cat(bn2(y2), x)) -> maxpool, with the window copies as a LEADING axis
    # of size kk and pairwise maxima over full (rows, channels) slabs (VPU).
    sc = sc_ref[...]
    sh = sh_ref[...]

    def branch_y(s):
        # BN2-apply + ReLU fused.  Window pad slots (raw value 0) are forced to
        # 0 after the ReLU via the mask; since every window contains at least
        # one real element and post-ReLU values are >= 0, a 0 never wins the max
        # (same result as nn.MaxPool2d's -inf padding).
        return jnp.maximum(wy_ref[s] * sc + sh, 0.0) * mask_ref[s]

    def branch_x(s):
        return jnp.maximum(wx_ref[s], 0.0)  # pads are raw zeros -> relu gives 0

    my = branch_y(0)
    mx = branch_x(0)
    for s in range(1, kk):               # static unroll over the kh*kw windows
        my = jnp.maximum(my, branch_y(s))
        mx = jnp.maximum(mx, branch_x(s))
    oy_ref[...] = my
    ox_ref[...] = mx


# ---------------------------------------------------------------------------
# Wrappers (JAX glue + pallas_call)
# ---------------------------------------------------------------------------
def conv2d_bias_stats(x_nhwc, weight_oihw, bias, padding, use_bf16=False):
    """Stride-1 'same' conv + bias, plus per-channel sum / sum-of-squares of the
    conv output (for batch-mode BatchNorm), in a single pallas_call.
    Returns (y_nhwc, sum_c, sumsq_c)."""
    N, H, W, Cin = x_nhwc.shape
    Cout, Cin_w, kh, kw = weight_oihw.shape
    assert Cin_w == Cin and kh == kw
    assert 2 * padding == kh - 1, "stride-1 'same' conv assumed (module config)"

    # im2col in NHWC (glue).
    # TODO(synk): at production sizes, build the patch tile in-kernel from a
    # haloed VMEM window to avoid the kh*kw HBM blow-up of the patch matrix.
    xp = jnp.pad(x_nhwc, ((0, 0), (padding, padding), (padding, padding), (0, 0)))
    cols = [xp[:, di:di + H, dj:dj + W, :] for di in range(kh) for dj in range(kw)]
    patches = jnp.stack(cols, axis=-1)                    # (N,H,W,Cin,kh*kw)
    patches = patches.reshape(N * H * W, Cin * kh * kw)   # K idx = c*kh*kw + di*kw + dj
    wmat = weight_oihw.reshape(Cout, Cin * kh * kw).T     # matches PyTorch flatten
    bmat = bias.reshape(1, Cout).astype(jnp.float32)

    if use_bf16:  # v6e/v7x: bf16 MXU inputs, f32 accumulation (epilogue stays f32)
        patches = patches.astype(jnp.bfloat16)
        wmat = wmat.astype(jnp.bfloat16)

    M, K = patches.shape
    tm = _row_block(M)
    grid = (M // tm,)

    y, s1, s2 = pl.pallas_call(
        _conv_bias_stats_kernel,
        grid=grid,
        in_specs=[
            pl.BlockSpec((tm, K), lambda i: (i, 0)),
            pl.BlockSpec((K, Cout), lambda i: (0, 0)),
            pl.BlockSpec((1, Cout), lambda i: (0, 0)),
        ],
        out_specs=[
            pl.BlockSpec((tm, Cout), lambda i: (i, 0)),
            pl.BlockSpec((1, Cout), lambda i: (0, 0)),   # revisited -> accumulator
            pl.BlockSpec((1, Cout), lambda i: (0, 0)),   # revisited -> accumulator
        ],
        out_shape=[
            jax.ShapeDtypeStruct((M, Cout), jnp.float32),
            jax.ShapeDtypeStruct((1, Cout), jnp.float32),
            jax.ShapeDtypeStruct((1, Cout), jnp.float32),
        ],
        compiler_params=pltpu.CompilerParams(
            # The row axis carries the stats accumulator -> sequential.
            dimension_semantics=("arbitrary",)),
    )(patches, wmat, bmat)
    return y.reshape(N, H, W, Cout), s1[0], s2[0]


def _bn_scale_shift(s1, s2, gamma, beta, count):
    # Training-mode (biased) batch statistics from fused sum / sum-of-squares.
    mean = s1 / count
    var = jnp.maximum(s2 / count - mean * mean, 0.0)
    scale = gamma * lax.rsqrt(var + EPS)
    shift = beta - mean * scale
    return scale, shift


def fused_bn_relu_maxpool(y_nhwc, x_nhwc, scale2, shift2, kernel, padding):
    """relu(cat(bn2(y2), x)) -> MaxPool2d(kernel, stride=kernel, padding).
    The concat is fused: the bn2 branch and the residual branch enter the kernel
    as separate refs; the merged feature map is never materialized in HBM."""
    N, H, W, C = y_nhwc.shape
    assert x_nhwc.shape == y_nhwc.shape
    stride = kernel
    Ho = (H + 2 * padding - kernel) // stride + 1
    Wo = (W + 2 * padding - kernel) // stride + 1
    kk = kernel * kernel

    def windows(img):
        Ci = img.shape[-1]
        xp = jnp.pad(img, ((0, 0), (padding, padding), (padding, padding), (0, 0)))
        cols = []
        for di in range(kernel):
            for dj in range(kernel):
                sl = lax.slice(
                    xp, (0, di, dj, 0),
                    (N, di + stride * (Ho - 1) + 1, dj + stride * (Wo - 1) + 1, Ci),
                    (1, stride, stride, 1))                # (N, Ho, Wo, Ci)
                cols.append(sl.reshape(N * Ho * Wo, Ci))
        return jnp.stack(cols, axis=0)                     # (kk, N*Ho*Wo, Ci)

    wy = windows(y_nhwc)                                   # raw conv2 output (pre-BN)
    wx = windows(x_nhwc)                                   # residual branch
    mask = windows(jnp.ones((N, H, W, 1), jnp.float32))    # 1 = real, 0 = pad

    Mo = N * Ho * Wo
    tmo = _row_block(Mo)
    grid = (Mo // tmo,)

    py, px = pl.pallas_call(
        functools.partial(_bn_relu_pool_kernel, kk),
        grid=grid,
        in_specs=[
            pl.BlockSpec((kk, tmo, C), lambda i: (0, i, 0)),
            pl.BlockSpec((kk, tmo, C), lambda i: (0, i, 0)),
            pl.BlockSpec((kk, tmo, 1), lambda i: (0, i, 0)),
            pl.BlockSpec((1, C), lambda i: (0, 0)),
            pl.BlockSpec((1, C), lambda i: (0, 0)),
        ],
        out_specs=[
            pl.BlockSpec((tmo, C), lambda i: (i, 0)),
            pl.BlockSpec((tmo, C), lambda i: (i, 0)),
        ],
        out_shape=[
            jax.ShapeDtypeStruct((Mo, C), jnp.float32),
            jax.ShapeDtypeStruct((Mo, C), jnp.float32),
        ],
        compiler_params=pltpu.CompilerParams(
            dimension_semantics=("parallel",)),            # independent rows -> megacore
    )(wy, wx, mask, scale2.reshape(1, C), shift2.reshape(1, C))

    return py.reshape(N, Ho, Wo, C), px.reshape(N, Ho, Wo, C)


def residual_block_forward(x_nchw, params, kernel, padding, use_bf16=False):
    N, C, H, W = x_nchw.shape
    x_nhwc = jnp.transpose(x_nchw, (0, 2, 3, 1))           # channels-last, once on entry
    count = float(N * H * W)

    # conv1 + bias (+ BN1 batch stats), Pallas.
    y1, s1, q1 = conv2d_bias_stats(x_nhwc, params["w1"], params["b1"], padding, use_bf16)
    scale1, shift1 = _bn_scale_shift(s1, q1, params["g1"], params["be1"], count)

    # BN1-apply + ReLU1: elementwise, fused by XLA into the conv2 im2col producer
    # (no standalone pallas_call, no extra HBM round trip beyond the patch matrix).
    z1 = jnp.maximum(y1 * scale1.reshape(1, 1, 1, C) + shift1.reshape(1, 1, 1, C), 0.0)

    # conv2 + bias (+ BN2 batch stats), Pallas.
    y2, s2, q2 = conv2d_bias_stats(z1, params["w2"], params["b2"], padding, use_bf16)
    scale2, shift2 = _bn_scale_shift(s2, q2, params["g2"], params["be2"], count)

    # BN2-apply + ReLU2 + channel-concat + maxpool: one fused Pallas kernel.
    py, px = fused_bn_relu_maxpool(y2, x_nhwc, scale2, shift2, kernel, padding)

    out = jnp.concatenate([py, px], axis=-1)               # pooled (tiny) tensors only
    return jnp.transpose(out, (0, 3, 1, 2))                # back to NCHW, once on exit


# ---------------------------------------------------------------------------
# Pure-JAX reference (correctness check)
# ---------------------------------------------------------------------------
def reference_forward(x, params, kernel, padding):
    def conv(z, w, b):
        y = lax.conv_general_dilated(
            z, w, (1, 1), ((padding, padding), (padding, padding)),
            dimension_numbers=("NCHW", "OIHW", "NCHW"))
        return y + b.reshape(1, -1, 1, 1)

    def bn(z, g, be):
        mean = z.mean(axis=(0, 2, 3), keepdims=True)
        var = z.var(axis=(0, 2, 3), keepdims=True)
        return (z - mean) / jnp.sqrt(var + EPS) * g.reshape(1, -1, 1, 1) + be.reshape(1, -1, 1, 1)

    out = jax.nn.relu(bn(conv(x, params["w1"], params["b1"]), params["g1"], params["be1"]))
    out = bn(conv(out, params["w2"], params["b2"]), params["g2"], params["be2"])
    merge = jax.nn.relu(jnp.concatenate([out, x], axis=1))
    return lax.reduce_window(
        merge, -jnp.inf, lax.max,
        (1, 1, kernel, kernel), (1, 1, kernel, kernel),
        ((0, 0), (0, 0), (padding, padding), (padding, padding)))


# ---------------------------------------------------------------------------
if __name__ == "__main__":
    # TODO(synk): BatchNorm running-stat buffer updates (training side effect on
    # module buffers) do not affect the forward output and are not modeled.
    N, C, H, W = 2, 4, 16, 16
    kernel, padding = 3, 1

    keys = jax.random.split(jax.random.PRNGKey(0), 10)
    x = jax.random.normal(keys[0], (N, C, H, W), jnp.float32)
    params = {
        "w1": 0.2 * jax.random.normal(keys[1], (C, C, kernel, kernel), jnp.float32),
        "b1": 0.1 * jax.random.normal(keys[2], (C,), jnp.float32),
        "g1": 1.0 + 0.1 * jax.random.normal(keys[3], (C,), jnp.float32),
        "be1": 0.1 * jax.random.normal(keys[4], (C,), jnp.float32),
        "w2": 0.2 * jax.random.normal(keys[5], (C, C, kernel, kernel), jnp.float32),
        "b2": 0.1 * jax.random.normal(keys[6], (C,), jnp.float32),
        "g2": 1.0 + 0.1 * jax.random.normal(keys[7], (C,), jnp.float32),
        "be2": 0.1 * jax.random.normal(keys[8], (C,), jnp.float32),
    }

    fwd = jax.jit(functools.partial(residual_block_forward, kernel=kernel, padding=padding))
    out = jax.block_until_ready(fwd(x, params))
    ref = jax.block_until_ready(reference_forward(x, params, kernel, padding))

    Ho = (H + 2 * padding - kernel) // kernel + 1
    assert out.shape == (N, 2 * C, Ho, Ho), out.shape
    assert jnp.allclose(out, ref, atol=1e-4, rtol=1e-4), float(jnp.max(jnp.abs(out - ref)))
    print("KERNEL_OK")
</pallas_src>

<mosaic_0001>
module attributes {stable_mosaic.version = 11 : i64} {
  func.func @_conv_bias_stats_kernel(%arg0: i32, %arg1: memref<256x36xf32, #tpu.memory_space<vmem>>, %arg2: memref<36x4xf32, #tpu.memory_space<vmem>>, %arg3: memref<1x4xf32, #tpu.memory_space<vmem>>, %arg4: memref<256x4xf32, #tpu.memory_space<vmem>>, %arg5: memref<1x4xf32, #tpu.memory_space<vmem>>, %arg6: memref<1x4xf32, #tpu.memory_space<vmem>>) attributes {dimension_semantics = [#tpu.dimension_semantics<arbitrary>], iteration_bounds = array<i64: 2>, scalar_prefetch = 0 : i64, scratch_operands = 0 : i64, tpu.core_type = #tpu.core_type<tc>, window_params = [{transform_indices = @transform_0, window_bounds = array<i64: 256, 36>}, {pipeline_mode = #tpu.pipeline_mode<synchronous>, transform_indices = @transform_1, window_bounds = array<i64: 36, 4>}, {pipeline_mode = #tpu.pipeline_mode<synchronous>, transform_indices = @transform_2, window_bounds = array<i64: 1, 4>}, {transform_indices = @transform_3, window_bounds = array<i64: 256, 4>}, {pipeline_mode = #tpu.pipeline_mode<synchronous>, transform_indices = @transform_4, window_bounds = array<i64: 1, 4>}, {pipeline_mode = #tpu.pipeline_mode<synchronous>, transform_indices = @transform_5, window_bounds = array<i64: 1, 4>}]} {
    %c0 = arith.constant 0 : index
    %c0_0 = arith.constant 0 : index
    %0 = vector.load %arg1[%c0, %c0_0] : memref<256x36xf32, #tpu.memory_space<vmem>>, vector<256x36xf32>
    %c0_1 = arith.constant 0 : index
    %c0_2 = arith.constant 0 : index
    %1 = vector.load %arg2[%c0_1, %c0_2] : memref<36x4xf32, #tpu.memory_space<vmem>>, vector<36x4xf32>
    %cst = arith.constant dense<0.000000e+00> : vector<256x4xf32>
    %2 = tpu.matmul %0, %1, %cst {dimension_numbers = #tpu.dot_dimension_numbers<[1], [0], [0], [1], [0, 0, 1, 1], [], []>} : vector<256x36xf32>, vector<36x4xf32>, vector<256x4xf32> -> vector<256x4xf32>
    %c0_3 = arith.constant 0 : index
    %c0_4 = arith.constant 0 : index
    %3 = vector.load %arg3[%c0_3, %c0_4] : memref<1x4xf32, #tpu.memory_space<vmem>>, vector<1x4xf32>
    %4 = vector.broadcast %3 : vector<1x4xf32> to vector<256x4xf32>
    %5 = arith.addf %2, %4 : vector<256x4xf32>
    %c0_5 = arith.constant 0 : index
    %c0_6 = arith.constant 0 : index
    %6 = vector.load %arg4[%c0_5, %c0_6] : memref<256x4xf32, #tpu.memory_space<vmem>>, vector<256x4xf32>
    tpu.vector_store %arg4[%c0_5, %c0_6], %5 {strides = array<i32>} : memref<256x4xf32, #tpu.memory_space<vmem>>, vector<256x4xf32>,
    %c0_i32 = arith.constant 0 : i32
    %7 = arith.cmpi eq, %arg0, %c0_i32 : i32
    %8 = arith.extui %7 : i1 to i32
    %c0_i32_7 = arith.constant 0 : i32
    %9 = arith.cmpi ne, %8, %c0_i32_7 : i32
    scf.if %9 {
      %cst_18 = arith.constant 0.000000e+00 : f32
      %21 = vector.broadcast %cst_18 : f32 to vector<1x4xf32>
      %c0_19 = arith.constant 0 : index
      %c0_20 = arith.constant 0 : index
      %22 = vector.load %arg5[%c0_19, %c0_20] : memref<1x4xf32, #tpu.memory_space<vmem>>, vector<1x4xf32>
      tpu.vector_store %arg5[%c0_19, %c0_20], %21 {strides = array<i32>} : memref<1x4xf32, #tpu.memory_space<vmem>>, vector<1x4xf32>,
      %cst_21 = arith.constant 0.000000e+00 : f32
      %23 = vector.broadcast %cst_21 : f32 to vector<1x4xf32>
      %c0_22 = arith.constant 0 : index
      %c0_23 = arith.constant 0 : index
      %24 = vector.load %arg6[%c0_22, %c0_23] : memref<1x4xf32, #tpu.memory_space<vmem>>, vector<1x4xf32>
      tpu.vector_store %arg6[%c0_22, %c0_23], %23 {strides = array<i32>} : memref<1x4xf32, #tpu.memory_space<vmem>>, vector<1x4xf32>,
    } else {
    }
    %c0_8 = arith.constant 0 : index
    %c0_9 = arith.constant 0 : index
    %10 = vector.load %arg5[%c0_8, %c0_9] : memref<1x4xf32, #tpu.memory_space<vmem>>, vector<1x4xf32>
    %cst_10 = arith.constant dense<0.000000e+00> : vector<4xf32>
    %11 = vector.multi_reduction <add>, %5, %cst_10 [0] : vector<256x4xf32> to vector<4xf32>
    %12 = vector.shape_cast %11 : vector<4xf32> to vector<1x4xf32>
    %13 = arith.addf %10, %12 : vector<1x4xf32>
    %c0_11 = arith.constant 0 : index
    %c0_12 = arith.constant 0 : index
    %14 = vector.load %arg5[%c0_11, %c0_12] : memref<1x4xf32, #tpu.memory_space<vmem>>, vector<1x4xf32>
    tpu.vector_store %arg5[%c0_11, %c0_12], %13 {strides = array<i32>} : memref<1x4xf32, #tpu.memory_space<vmem>>, vector<1x4xf32>,
    %c0_13 = arith.constant 0 : index
    %c0_14 = arith.constant 0 : index
    %15 = vector.load %arg6[%c0_13, %c0_14] : memref<1x4xf32, #tpu.memory_space<vmem>>, vector<1x4xf32>
    %16 = arith.mulf %5, %5 : vector<256x4xf32>
    %cst_15 = arith.constant dense<0.000000e+00> : vector<4xf32>
    %17 = vector.multi_reduction <add>, %16, %cst_15 [0] : vector<256x4xf32> to vector<4xf32>
    %18 = vector.shape_cast %17 : vector<4xf32> to vector<1x4xf32>
    %19 = arith.addf %15, %18 : vector<1x4xf32>
    %c0_16 = arith.constant 0 : index
    %c0_17 = arith.constant 0 : index
    %20 = vector.load %arg6[%c0_16, %c0_17] : memref<1x4xf32, #tpu.memory_space<vmem>>, vector<1x4xf32>
    tpu.vector_store %arg6[%c0_16, %c0_17], %19 {strides = array<i32>} : memref<1x4xf32, #tpu.memory_space<vmem>>, vector<1x4xf32>,
    return
  }
  func.func @transform_0(%arg0: i32) -> (i32, i32) {
    %c0_i32 = arith.constant 0 : i32
    %c0_i32_0 = arith.constant 0 : i32
    return %arg0, %c0_i32 : i32, i32
  }
  func.func @transform_1(%arg0: i32) -> (i32, i32) {
    %c0_i32 = arith.constant 0 : i32
    %c0_i32_0 = arith.constant 0 : i32
    %c0_i32_1 = arith.constant 0 : i32
    return %c0_i32, %c0_i32_0 : i32, i32
  }
  func.func @transform_2(%arg0: i32) -> (i32, i32) {
    %c0_i32 = arith.constant 0 : i32
    %c0_i32_0 = arith.constant 0 : i32
    %c0_i32_1 = arith.constant 0 : i32
    return %c0_i32, %c0_i32_0 : i32, i32
  }
  func.func @transform_3(%arg0: i32) -> (i32, i32) {
    %c0_i32 = arith.constant 0 : i32
    %c0_i32_0 = arith.constant 0 : i32
    return %arg0, %c0_i32 : i32, i32
  }
  func.func @transform_4(%arg0: i32) -> (i32, i32) {
    %c0_i32 = arith.constant 0 : i32
    %c0_i32_0 = arith.constant 0 : i32
    %c0_i32_1 = arith.constant 0 : i32
    return %c0_i32, %c0_i32_0 : i32, i32
  }
  func.func @transform_5(%arg0: i32) -> (i32, i32) {
    %c0_i32 = arith.constant 0 : i32
    %c0_i32_0 = arith.constant 0 : i32
    %c0_i32_1 = arith.constant 0 : i32
    return %c0_i32, %c0_i32_0 : i32, i32
  }
}

module attributes {stable_mosaic.version = 11 : i64} {
  func.func @_bn_relu_pool_kernel(%arg0: i32, %arg1: memref<9x72x4xf32, #tpu.memory_space<vmem>>, %arg2: memref<9x72x4xf32, #tpu.memory_space<vmem>>, %arg3: memref<9x72x1xf32, #tpu.memory_space<vmem>>, %arg4: memref<1x4xf32, #tpu.memory_space<vmem>>, %arg5: memref<1x4xf32, #tpu.memory_space<vmem>>, %arg6: memref<72x4xf32, #tpu.memory_space<vmem>>, %arg7: memref<72x4xf32, #tpu.memory_space<vmem>>) attributes {dimension_semantics = [#tpu.dimension_semantics<parallel>], iteration_bounds = array<i64: 1>, scalar_prefetch = 0 : i64, scratch_operands = 0 : i64, tpu.core_type = #tpu.core_type<tc>, window_params = [{transform_indices = @transform_0, window_bounds = array<i64: 9, 72, 4>}, {transform_indices = @transform_1, window_bounds = array<i64: 9, 72, 4>}, {transform_indices = @transform_2, window_bounds = array<i64: 9, 72, 1>}, {pipeline_mode = #tpu.pipeline_mode<synchronous>, transform_indices = @transform_3, window_bounds = array<i64: 1, 4>}, {pipeline_mode = #tpu.pipeline_mode<synchronous>, transform_indices = @transform_4, window_bounds = array<i64: 1, 4>}, {transform_indices = @transform_5, window_bounds = array<i64: 72, 4>}, {transform_indices = @transform_6, window_bounds = array<i64: 72, 4>}]} {
    %c0 = arith.constant 0 : index
    %c0_0 = arith.constant 0 : index
    %0 = vector.load %arg4[%c0, %c0_0] : memref<1x4xf32, #tpu.memory_space<vmem>>, vector<1x4xf32>
    %c0_1 = arith.constant 0 : index
    %c0_2 = arith.constant 0 : index
    %1 = vector.load %arg5[%c0_1, %c0_2] : memref<1x4xf32, #tpu.memory_space<vmem>>, vector<1x4xf32>
    %c0_3 = arith.constant 0 : index
    %c0_4 = arith.constant 0 : index
    %c0_5 = arith.constant 0 : index
    %2 = vector.load %arg1[%c0_3, %c0_4, %c0_5] : memref<9x72x4xf32, #tpu.memory_space<vmem>>, vector<1x72x4xf32>
    %3 = vector.shape_cast %2 : vector<1x72x4xf32> to vector<72x4xf32>
    %4 = vector.broadcast %0 : vector<1x4xf32> to vector<72x4xf32>
    %5 = arith.mulf %3, %4 : vector<72x4xf32>
    %6 = vector.broadcast %1 : vector<1x4xf32> to vector<72x4xf32>
    %7 = arith.addf %5, %6 : vector<72x4xf32>
    %cst = arith.constant 0.000000e+00 : f32
    %8 = vector.broadcast %cst : f32 to vector<72x4xf32>
    %9 = arith.maximumf %7, %8 : vector<72x4xf32>
    %c0_6 = arith.constant 0 : index
    %c0_7 = arith.constant 0 : index
    %c0_8 = arith.constant 0 : index
    %10 = vector.load %arg3[%c0_6, %c0_7, %c0_8] : memref<9x72x1xf32, #tpu.memory_space<vmem>>, vector<1x72x1xf32>
    %11 = vector.shape_cast %10 : vector<1x72x1xf32> to vector<72x1xf32>
    %12 = vector.broadcast %11 : vector<72x1xf32> to vector<72x4xf32>
    %13 = arith.mulf %9, %12 : vector<72x4xf32>
    %c0_9 = arith.constant 0 : index
    %c0_10 = arith.constant 0 : index
    %c0_11 = arith.constant 0 : index
    %14 = vector.load %arg2[%c0_9, %c0_10, %c0_11] : memref<9x72x4xf32, #tpu.memory_space<vmem>>, vector<1x72x4xf32>
    %15 = vector.shape_cast %14 : vector<1x72x4xf32> to vector<72x4xf32>
    %cst_12 = arith.constant 0.000000e+00 : f32
    %16 = vector.broadcast %cst_12 : f32 to vector<72x4xf32>
    %17 = arith.maximumf %15, %16 : vector<72x4xf32>
    %c1 = arith.constant 1 : index
    %c0_13 = arith.constant 0 : index
    %c0_14 = arith.constant 0 : index
    %18 = vector.load %arg1[%c1, %c0_13, %c0_14] : memref<9x72x4xf32, #tpu.memory_space<vmem>>, vector<1x72x4xf32>
    %19 = vector.shape_cast %18 : vector<1x72x4xf32> to vector<72x4xf32>
    %20 = vector.broadcast %0 : vector<1x4xf32> to vector<72x4xf32>
    %21 = arith.mulf %19, %20 : vector<72x4xf32>
    %22 = vector.broadcast %1 : vector<1x4xf32> to vector<72x4xf32>
    %23 = arith.addf %21, %22 : vector<72x4xf32>
    %cst_15 = arith.constant 0.000000e+00 : f32
    %24 = vector.broadcast %cst_15 : f32 to vector<72x4xf32>
    %25 = arith.maximumf %23, %24 : vector<72x4xf32>
    %c1_16 = arith.constant 1 : index
    %c0_17 = arith.constant 0 : index
    %c0_18 = arith.constant 0 : index
    %26 = vector.load %arg3[%c1_16, %c0_17, %c0_18] : memref<9x72x1xf32, #tpu.memory_space<vmem>>, vector<1x72x1xf32>
    %27 = vector.shape_cast %26 : vector<1x72x1xf32> to vector<72x1xf32>
    %28 = vector.broadcast %27 : vector<72x1xf32> to vector<72x4xf32>
    %29 = arith.mulf %25, %28 : vector<72x4xf32>
    %30 = arith.maximumf %13, %29 : vector<72x4xf32>
    %c1_19 = arith.constant 1 : index
    %c0_20 = arith.constant 0 : index
    %c0_21 = arith.constant 0 : index
    %31 = vector.load %arg2[%c1_19, %c0_20, %c0_21] : memref<9x72x4xf32, #tpu.memory_space<vmem>>, vector<1x72x4xf32>
    %32 = vector.shape_cast %31 : vector<1x72x4xf32> to vector<72x4xf32>
    %cst_22 = arith.constant 0.000000e+00 : f32
    %33 = vector.broadcast %cst_22 : f32 to vector<72x4xf32>
    %34 = arith.maximumf %32, %33 : vector<72x4xf32>
    %35 = arith.maximumf %17, %34 : vector<72x4xf32>
    %c2 = arith.constant 2 : index
    %c0_23 = arith.constant 0 : index
    %c0_24 = arith.constant 0 : index
    %36 = vector.load %arg1[%c2, %c0_23, %c0_24] : memref<9x72x4xf32, #tpu.memory_space<vmem>>, vector<1x72x4xf32>
    %37 = vector.shape_cast %36 : vector<1x72x4xf32> to vector<72x4xf32>
    %38 = vector.broadcast %0 : vector<1x4xf32> to vector<72x4xf32>
    %39 = arith.mulf %37, %38 : vector<72x4xf32>
    %40 = vector.broadcast %1 : vector<1x4xf32> to vector<72x4xf32>
    %41 = arith.addf %39, %40 : vector<72x4xf32>
    %cst_25 = arith.constant 0.000000e+00 : f32
    %42 = vector.broadcast %cst_25 : f32 to vector<72x4xf32>
    %43 = arith.maximumf %41, %42 : vector<72x4xf32>
    %c2_26 = arith.constant 2 : index
    %c0_27 = arith.constant 0 : index
    %c0_28 = arith.constant 0 : index
    %44 = vector.load %arg3[%c2_26, %c0_27, %c0_28] : memref<9x72x1xf32, #tpu.memory_space<vmem>>, vector<1x72x1xf32>
    %45 = vector.shape_cast %44 : vector<1x72x1xf32> to vector<72x1xf32>
    %46 = vector.broadcast %45 : vector<72x1xf32> to vector<72x4xf32>
    %47 = arith.mulf %43, %46 : vector<72x4xf32>
    %48 = arith.maximumf %30, %47 : vector<72x4xf32>
    %c2_29 = arith.constant 2 : index
    %c0_30 = arith.constant 0 : index
    %c0_31 = arith.constant 0 : index
    %49 = vector.load %arg2[%c2_29, %c0_30, %c0_31] : memref<9x72x4xf32, #tpu.memory_space<vmem>>, vector<1x72x4xf32>
    %50 = vector.shape_cast %49 : vector<1x72x4xf32> to vector<72x4xf32>
    %cst_32 = arith.constant 0.000000e+00 : f32
    %51 = vector.broadcast %cst_32 : f32 to vector<72x4xf32>
    %52 = arith.maximumf %50, %51 : vector<72x4xf32>
    %53 = arith.maximumf %35, %52 : vector<72x4xf32>
    %c3 = arith.constant 3 : index
    %c0_33 = arith.constant 0 : index
    %c0_34 = arith.constant 0 : index
    %54 = vector.load %arg1[%c3, %c0_33, %c0_34] : memref<9x72x4xf32, #tpu.memory_space<vmem>>, vector<1x72x4xf32>
    %55 = vector.shape_cast %54 : vector<1x72x4xf32> to vector<72x4xf32>
    %56 = vector.broadcast %0 : vector<1x4xf32> to vector<72x4xf32>
    %57 = arith.mulf %55, %56 : vector<72x4xf32>
    %58 = vector.broadcast %1 : vector<1x4xf32> to vector<72x4xf32>
    %59 = arith.addf %57, %58 : vector<72x4xf32>
    %cst_35 = arith.constant 0.000000e+00 : f32
    %60 = vector.broadcast %cst_35 : f32 to vector<72x4xf32>
    %61 = arith.maximumf %59, %60 : vector<72x4xf32>
    %c3_36 = arith.constant 3 : index
    %c0_37 = arith.constant 0 : index
    %c0_38 = arith.constant 0 : index
    %62 = vector.load %arg3[%c3_36, %c0_37, %c0_38] : memref<9x72x1xf32, #tpu.memory_space<vmem>>, vector<1x72x1xf32>
    %63 = vector.shape_cast %62 : vector<1x72x1xf32> to vector<72x1xf32>
    %64 = vector.broadcast %63 : vector<72x1xf32> to vector<72x4xf32>
    %65 = arith.mulf %61, %64 : vector<72x4xf32>
    %66 = arith.maximumf %48, %65 : vector<72x4xf32>
    %c3_39 = arith.constant 3 : index
    %c0_40 = arith.constant 0 : index
    %c0_41 = arith.constant 0 : index
    %67 = vector.load %arg2[%c3_39, %c0_40, %c0_41] : memref<9x72x4xf32, #tpu.memory_space<vmem>>, vector<1x72x4xf32>
    %68 = vector.shape_cast %67 : vector<1x72x4xf32> to vector<72x4xf32>
    %cst_42 = arith.constant 0.000000e+00 : f32
    %69 = vector.broadcast %cst_42 : f32 to vector<72x4xf32>
    %70 = arith.maximumf %68, %69 : vector<72x4xf32>
    %71 = arith.maximumf %53, %70 : vector<72x4xf32>
    %c4 = arith.constant 4 : index
    %c0_43 = arith.constant 0 : index
    %c0_44 = arith.constant 0 : index
    %72 = vector.load %arg1[%c4, %c0_43, %c0_44] : memref<9x72x4xf32, #tpu.memory_space<vmem>>, vector<1x72x4xf32>
    %73 = vector.shape_cast %72 : vector<1x72x4xf32> to vector<72x4xf32>
    %74 = vector.broadcast %0 : vector<1x4xf32> to vector<72x4xf32>
    %75 = arith.mulf %73, %74 : vector<72x4xf32>
    %76 = vector.broadcast %1 : vector<1x4xf32> to vector<72x4xf32>
    %77 = arith.addf %75, %76 : vector<72x4xf32>
    %cst_45 = arith.constant 0.000000e+00 : f32
    %78 = vector.broadcast %cst_45 : f32 to vector<72x4xf32>
    %79 = arith.maximumf %77, %78 : vector<72x4xf32>
    %c4_46 = arith.constant 4 : index
    %c0_47 = arith.constant 0 : index
    %c0_48 = arith.constant 0 : index
    %80 = vector.load %arg3[%c4_46, %c0_47, %c0_48] : memref<9x72x1xf32, #tpu.memory_space<vmem>>, vector<1x72x1xf32>
    %81 = vector.shape_cast %80 : vector<1x72x1xf32> to vector<72x1xf32>
    %82 = vector.broadcast %81 : vector<72x1xf32> to vector<72x4xf32>
    %83 = arith.mulf %79, %82 : vector<72x4xf32>
    %84 = arith.maximumf %66, %83 : vector<72x4xf32>
    %c4_49 = arith.constant 4 : index
    %c0_50 = arith.constant 0 : index
    %c0_51 = arith.constant 0 : index
    %85 = vector.load %arg2[%c4_49, %c0_50, %c0_51] : memref<9x72x4xf32, #tpu.memory_space<vmem>>, vector<1x72x4xf32>
    %86 = vector.shape_cast %85 : vector<1x72x4xf32> to vector<72x4xf32>
    %cst_52 = arith.constant 0.000000e+00 : f32
    %87 = vector.broadcast %cst_52 : f32 to vector<72x4xf32>
    %88 = arith.maximumf %86, %87 : vector<72x4xf32>
    %89 = arith.maximumf %71, %88 : vector<72x4xf32>
    %c5 = arith.constant 5 : index
    %c0_53 = arith.constant 0 : index
    %c0_54 = arith.constant 0 : index
    %90 = vector.load %arg1[%c5, %c0_53, %c0_54] : memref<9x72x4xf32, #tpu.memory_space<vmem>>, vector<1x72x4xf32>
    %91 = vector.shape_cast %90 : vector<1x72x4xf32> to vector<72x4xf32>
    %92 = vector.broadcast %0 : vector<1x4xf32> to vector<72x4xf32>
    %93 = arith.mulf %91, %92 : vector<72x4xf32>
    %94 = vector.broadcast %1 : vector<1x4xf32> to vector<72x4xf32>
    %95 = arith.addf %93, %94 : vector<72x4xf32>
    %cst_55 = arith.constant 0.000000e+00 : f32
    %96 = vector.broadcast %cst_55 : f32 to vector<72x4xf32>
    %97 = arith.maximumf %95, %96 : vector<72x4xf32>
    %c5_56 = arith.constant 5 : index
    %c0_57 = arith.constant 0 : index
    %c0_58 = arith.constant 0 : index
    %98 = vector.load %arg3[%c5_56, %c0_57, %c0_58] : memref<9x72x1xf32, #tpu.memory_space<vmem>>, vector<1x72x1xf32>
    %99 = vector.shape_cast %98 : vector<1x72x1xf32> to vector<72x1xf32>
    %100 = vector.broadcast %99 : vector<72x1xf32> to vector<72x4xf32>
    %101 = arith.mulf %97, %100 : vector<72x4xf32>
    %102 = arith.maximumf %84, %101 : vector<72x4xf32>
    %c5_59 = arith.constant 5 : index
    %c0_60 = arith.constant 0 : index
    %c0_61 = arith.constant 0 : index
    %103 = vector.load %arg2[%c5_59, %c0_60, %c0_61] : memref<9x72x4xf32, #tpu.memory_space<vmem>>, vector<1x72x4xf32>
    %104 = vector.shape_cast %103 : vector<1x72x4xf32> to vector<72x4xf32>
    %cst_62 = arith.constant 0.000000e+00 : f32
    %105 = vector.broadcast %cst_62 : f32 to vector<72x4xf32>
    %106 = arith.maximumf %104, %105 : vector<72x4xf32>
    %107 = arith.maximumf %89, %106 : vector<72x4xf32>
    %c6 = arith.constant 6 : index
    %c0_63 = arith.constant 0 : index
    %c0_64 = arith.constant 0 : index
    %108 = vector.load %arg1[%c6, %c0_63, %c0_64] : memref<9x72x4xf32, #tpu.memory_space<vmem>>, vector<1x72x4xf32>
    %109 = vector.shape_cast %108 : vector<1x72x4xf32> to vector<72x4xf32>
    %110 = vector.broadcast %0 : vector<1x4xf32> to vector<72x4xf32>
    %111 = arith.mulf %109, %110 : vector<72x4xf32>
    %112 = vector.broadcast %1 : vector<1x4xf32> to vector<72x4xf32>
    %113 = arith.addf %111, %112 : vector<72x4xf32>
    %cst_65 = arith.constant 0.000000e+00 : f32
    %114 = vector.broadcast %cst_65 : f32 to vector<72x4xf32>
    %115 = arith.maximumf %113, %114 : vector<72x4xf32>
    %c6_66 = arith.constant 6 : index
    %c0_67 = arith.constant 0 : index
    %c0_68 = arith.constant 0 : index
    %116 = vector.load %arg3[%c6_66, %c0_67, %c0_68] : memref<9x72x1xf32, #tpu.memory_space<vmem>>, vector<1x72x1xf32>
    %117 = vector.shape_cast %116 : vector<1x72x1xf32> to vector<72x1xf32>
    %118 = vector.broadcast %117 : vector<72x1xf32> to vector<72x4xf32>
    %119 = arith.mulf %115, %118 : vector<72x4xf32>
    %120 = arith.maximumf %102, %119 : vector<72x4xf32>
    %c6_69 = arith.constant 6 : index
    %c0_70 = arith.constant 0 : index
    %c0_71 = arith.constant 0 : index
    %121 = vector.load %arg2[%c6_69, %c0_70, %c0_71] : memref<9x72x4xf32, #tpu.memory_space<vmem>>, vector<1x72x4xf32>
    %122 = vector.shape_cast %121 : vector<1x72x4xf32> to vector<72x4xf32>
    %cst_72 = arith.constant 0.000000e+00 : f32
    %123 = vector.broadcast %cst_72 : f32 to vector<72x4xf32>
    %124 = arith.maximumf %122, %123 : vector<72x4xf32>
    %125 = arith.maximumf %107, %124 : vector<72x4xf32>
    %c7 = arith.constant 7 : index
    %c0_73 = arith.constant 0 : index
    %c0_74 = arith.constant 0 : index
    %126 = vector.load %arg1[%c7, %c0_73, %c0_74] : memref<9x72x4xf32, #tpu.memory_space<vmem>>, vector<1x72x4xf32>
    %127 = vector.shape_cast %126 : vector<1x72x4xf32> to vector<72x4xf32>
    %128 = vector.broadcast %0 : vector<1x4xf32> to vector<72x4xf32>
    %129 = arith.mulf %127, %128 : vector<72x4xf32>
    %130 = vector.broadcast %1 : vector<1x4xf32> to vector<72x4xf32>
    %131 = arith.addf %129, %130 : vector<72x4xf32>
    %cst_75 = arith.constant 0.000000e+00 : f32
    %132 = vector.broadcast %cst_75 : f32 to vector<72x4xf32>
    %133 = arith.maximumf %131, %132 : vector<72x4xf32>
    %c7_76 = arith.constant 7 : index
    %c0_77 = arith.constant 0 : index
    %c0_78 = arith.constant 0 : index
    %134 = vector.load %arg3[%c7_76, %c0_77, %c0_78] : memref<9x72x1xf32, #tpu.memory_space<vmem>>, vector<1x72x1xf32>
    %135 = vector.shape_cast %134 : vector<1x72x1xf32> to vector<72x1xf32>
    %136 = vector.broadcast %135 : vector<72x1xf32> to vector<72x4xf32>
    %137 = arith.mulf %133, %136 : vector<72x4xf32>
    %138 = arith.maximumf %120, %137 : vector<72x4xf32>
    %c7_79 = arith.constant 7 : index
    %c0_80 = arith.constant 0 : index
    %c0_81 = arith.constant 0 : index
    %139 = vector.load %arg2[%c7_79, %c0_80, %c0_81] : memref<9x72x4xf32, #tpu.memory_space<vmem>>, vector<1x72x4xf32>
    %140 = vector.shape_cast %139 : vector<1x72x4xf32> to vector<72x4xf32>
    %cst_82 = arith.constant 0.000000e+00 : f32
    %141 = vector.broadcast %cst_82 : f32 to vector<72x4xf32>
    %142 = arith.maximumf %140, %141 : vector<72x4xf32>
    %143 = arith.maximumf %125, %142 : vector<72x4xf32>
    %c8 = arith.constant 8 : index
    %c0_83 = arith.constant 0 : index
    %c0_84 = arith.constant 0 : index
    %144 = vector.load %arg1[%c8, %c0_83, %c0_84] : memref<9x72x4xf32, #tpu.memory_space<vmem>>, vector<1x72x4xf32>
    %145 = vector.shape_cast %144 : vector<1x72x4xf32> to vector<72x4xf32>
    %146 = vector.broadcast %0 : vector<1x4xf32> to vector<72x4xf32>
    %147 = arith.mulf %145, %146 : vector<72x4xf32>
    %148 = vector.broadcast %1 : vector<1x4xf32> to vector<72x4xf32>
    %149 = arith.addf %147, %148 : vector<72x4xf32>
    %cst_85 = arith.constant 0.000000e+00 : f32
    %150 = vector.broadcast %cst_85 : f32 to vector<72x4xf32>
    %151 = arith.maximumf %149, %150 : vector<72x4xf32>
    %c8_86 = arith.constant 8 : index
    %c0_87 = arith.constant 0 : index
    %c0_88 = arith.constant 0 : index
    %152 = vector.load %arg3[%c8_86, %c0_87, %c0_88] : memref<9x72x1xf32, #tpu.memory_space<vmem>>, vector<1x72x1xf32>
    %153 = vector.shape_cast %152 : vector<1x72x1xf32> to vector<72x1xf32>
    %154 = vector.broadcast %153 : vector<72x1xf32> to vector<72x4xf32>
    %155 = arith.mulf %151, %154 : vector<72x4xf32>
    %156 = arith.maximumf %138, %155 : vector<72x4xf32>
    %c8_89 = arith.constant 8 : index
    %c0_90 = arith.constant 0 : index
    %c0_91 = arith.constant 0 : index
    %157 = vector.load %arg2[%c8_89, %c0_90, %c0_91] : memref<9x72x4xf32, #tpu.memory_space<vmem>>, vector<1x72x4xf32>
    %158 = vector.shape_cast %157 : vector<1x72x4xf32> to vector<72x4xf32>
    %cst_92 = arith.constant 0.000000e+00 : f32
    %159 = vector.broadcast %cst_92 : f32 to vector<72x4xf32>
    %160 = arith.maximumf %158, %159 : vector<72x4xf32>
    %161 = arith.maximumf %143, %160 : vector<72x4xf32>
    %c0_93 = arith.constant 0 : index
    %c0_94 = arith.constant 0 : index
    %162 = vector.load %arg6[%c0_93, %c0_94] : memref<72x4xf32, #tpu.memory_space<vmem>>, vector<72x4xf32>
    tpu.vector_store %arg6[%c0_93, %c0_94], %156 {strides = array<i32>} : memref<72x4xf32, #tpu.memory_space<vmem>>, vector<72x4xf32>,
    %c0_95 = arith.constant 0 : index
    %c0_96 = arith.constant 0 : index
    %163 = vector.load %arg7[%c0_95, %c0_96] : memref<72x4xf32, #tpu.memory_space<vmem>>, vector<72x4xf32>
    tpu.vector_store %arg7[%c0_95, %c0_96], %161 {strides = array<i32>} : memref<72x4xf32, #tpu.memory_space<vmem>>, vector<72x4xf32>,
    return
  }
  func.func @transform_0(%arg0: i32) -> (i32, i32, i32) {
    %c0_i32 = arith.constant 0 : i32
    %c0_i32_0 = arith.constant 0 : i32
    %c0_i32_1 = arith.constant 0 : i32
    return %c0_i32, %arg0, %c0_i32_0 : i32, i32, i32
  }
  func.func @transform_1(%arg0: i32) -> (i32, i32, i32) {
    %c0_i32 = arith.constant 0 : i32
    %c0_i32_0 = arith.constant 0 : i32
    %c0_i32_1 = arith.constant 0 : i32
    return %c0_i32, %arg0, %c0_i32_0 : i32, i32, i32
  }
  func.func @transform_2(%arg0: i32) -> (i32, i32, i32) {
    %c0_i32 = arith.constant 0 : i32
    %c0_i32_0 = arith.constant 0 : i32
    %c0_i32_1 = arith.constant 0 : i32
    return %c0_i32, %arg0, %c0_i32_0 : i32, i32, i32
  }
  func.func @transform_3(%arg0: i32) -> (i32, i32) {
    %c0_i32 = arith.constant 0 : i32
    %c0_i32_0 = arith.constant 0 : i32
    %c0_i32_1 = arith.constant 0 : i32
    return %c0_i32, %c0_i32_0 : i32, i32
  }
  func.func @transform_4(%arg0: i32) -> (i32, i32) {
    %c0_i32 = arith.constant 0 : i32
    %c0_i32_0 = arith.constant 0 : i32
    %c0_i32_1 = arith.constant 0 : i32
    return %c0_i32, %c0_i32_0 : i32, i32
  }
  func.func @transform_5(%arg0: i32) -> (i32, i32) {
    %c0_i32 = arith.constant 0 : i32
    %c0_i32_0 = arith.constant 0 : i32
    return %arg0, %c0_i32 : i32, i32
  }
  func.func @transform_6(%arg0: i32) -> (i32, i32) {
    %c0_i32 = arith.constant 0 : i32
    %c0_i32_0 = arith.constant 0 : i32
    return %arg0, %c0_i32 : i32, i32
  }
}

</mosaic_0001>

<llo_original>
// kernel: residual_block_forward.3
$region0: #{residual_block_forward.3}
  #allocation0 [shape = 'u32[]', space=smem, size = 0x4, offset = 0x4, fixed_abs, tag = 'smem constant byte address 0x4 - core index']
  #allocation1 [shape = 'u32[144,128]{1,0:T(1,128)}', space=vmem, size = 0x12000, scoped, tag = 'internal scratch']
  %s0 = inlined_call_operand.vmem [shape: f32[512,36], index: 0, kind: input, shape index: {}]
  %s1 = inlined_call_operand.vmem [shape: f32[36,4], index: 1, kind: input, shape index: {}]
  %s2 = inlined_call_operand.vmem [shape: f32[1,4], index: 2, kind: input, shape index: {}]
  %s3 = inlined_call_operand.vmem [shape: f32[512,4], index: 3, kind: output, shape index: {0}]
  %s4 = inlined_call_operand.vmem [shape: f32[1,4], index: 4, kind: output, shape index: {1}]
  %s5 = inlined_call_operand.vmem [shape: f32[1,4], index: 5, kind: output, shape index: {2}]
  %6 = xla_tuple %s3, %s4, %s5
  %s7 = sld [smem:[#allocation0]]
  $region65: #{residual_block_forward.3} parent=0
    _
  %s9 = ssub.s32 1, %s7
  %s10 = scalar_select 0, %s9, %s7
  loop: start=0, step=1, limit=4
  $region2: #{residual_block_forward.3} parent=0 // loop_pre_header
    _
  $region3: #{residual_block_forward.3} parent=0 // loop_header
    %s12 = sphi 0, %s16
    %p13 = scmp.ge.s32.totalorder %s12, 4
    %s22 = sphi 0, %s24
    %s25 = sphi 0, %s22
    %s26 = sphi 0, %s25
    %s42 = sphi 0, %s26
    %s46 = sphi 0, %s46
    %s48 = sphi 0, %s46
    %s49 = sphi 0, %s48
    %s63 = sphi 0, %s49
    %s67 = sphi 0, %s67
    %s69 = sphi 0, %s67
    %s70 = sphi 0, %s69
    %s84 = sphi 0, %s70
    %s90 = sphi 0, %s92
    %s93 = sphi 0, %s90
    %s94 = sphi 0, %s93
    %s110 = sphi 0, %s94
    %s114 = sphi 0, %s114
    %s116 = sphi 0, %s114
    %s117 = sphi 0, %s116
    %s131 = sphi 0, %s117
    %s135 = sphi 0, %s135
    %s137 = sphi 0, %s135
    %s138 = sphi 0, %s137
    %s152 = sphi 0, %s138
  $region4: #{residual_block_forward.3} parent=0 // loop_header_branch
    %15 = sbr.rel (%p13) target = $region8
  $region5: #{residual_block_forward.3} parent=0 // loop_body
    %s17 = ssub.s32 %s12, 1
    %s18 = ssub.s32 %s12, 2
    %s19 = sadd.s32 %s12, 1
    %s20 = ssub.s32 %s12, %s19
    %p21 = scmp.eq.s32.totalorder %s20, 0
    %s23 = sadd.s32 %s22, 1
    %s24 = scalar_select %p21, %s22, %s23
    %p27 = pneg %p21
    %p28 = scmp.eq.s32.totalorder %s12, 1
    %p29 = por %p27, %p28
    %p30 = scmp.ne.s32.totalorder %s22, %s25
    %p31 = scmp.eq.s32.totalorder %s12, 0
    %p32 = por %p30, %p31
    %p33 = scmp.ne.s32.totalorder %s22, %s25
    %p34 = scmp.eq.s32.totalorder %s17, 1
    %p35 = por %p33, %p34
    %p36 = scmp.ne.s32.totalorder %s25, %s26
    %p37 = scmp.eq.s32.totalorder %s17, 0
    %p38 = por %p36, %p37
    %p39 = scmp.ne.s32.totalorder %s25, %s26
    %p40 = scmp.eq.s32.totalorder %s18, 1
    %p41 = por %p39, %p40
    %p43 = scmp.ne.s32.totalorder %s26, %s42
    %p44 = scmp.eq.s32.totalorder %s18, 0
    %p45 = por %p43, %p44
    %s47 = sadd.s32 %s46, 1
    %p50 = scmp.eq.s32.totalorder %s12, 1
    %p51 = scmp.ne.s32.totalorder %s46, %s48
    %p52 = scmp.eq.s32.totalorder %s12, 0
    %p53 = por %p51, %p52
    %p54 = scmp.ne.s32.totalorder %s46, %s48
    %p55 = scmp.eq.s32.totalorder %s17, 1
    %p56 = por %p54, %p55
    %p57 = scmp.ne.s32.totalorder %s48, %s49
    %p58 = scmp.eq.s32.totalorder %s17, 0
    %p59 = por %p57, %p58
    %p60 = scmp.ne.s32.totalorder %s48, %s49
    %p61 = scmp.eq.s32.totalorder %s18, 1
    %p62 = por %p60, %p61
    %p64 = scmp.ne.s32.totalorder %s49, %s63
    %p65 = scmp.eq.s32.totalorder %s18, 0
    %p66 = por %p64, %p65
    %s68 = sadd.s32 %s67, 1
    %p71 = scmp.eq.s32.totalorder %s12, 1
    %p72 = scmp.ne.s32.totalorder %s67, %s69
    %p73 = scmp.eq.s32.totalorder %s12, 0
    %p74 = por %p72, %p73
    %p75 = scmp.ne.s32.totalorder %s67, %s69
    %p76 = scmp.eq.s32.totalorder %s17, 1
    %p77 = por %p75, %p76
    %p78 = scmp.ne.s32.totalorder %s69, %s70
    %p79 = scmp.eq.s32.totalorder %s17, 0
    %p80 = por %p78, %p79
    %p81 = scmp.ne.s32.totalorder %s69, %s70
    %p82 = scmp.eq.s32.totalorder %s18, 1
    %p83 = por %p81, %p82
    %p85 = scmp.ne.s32.totalorder %s70, %s84
    %p86 = scmp.eq.s32.totalorder %s18, 0
    %p87 = por %p85, %p86
    %s88 = ssub.s32 %s12, %s19
    %p89 = scmp.eq.s32.totalorder %s88, 0
    %s91 = sadd.s32 %s90, 1
    %s92 = scalar_select %p89, %s90, %s91
    %p95 = pneg %p89
    %p96 = scmp.eq.s32.totalorder %s12, 1
    %p97 = por %p95, %p96
    %p98 = scmp.ne.s32.totalorder %s90, %s93
    %p99 = scmp.eq.s32.totalorder %s12, 0
    %p100 = por %p98, %p99
    %p101 = scmp.ne.s32.totalorder %s90, %s93
    %p102 = scmp.eq.s32.totalorder %s17, 1
    %p103 = por %p101, %p102
    %p104 = scmp.ne.s32.totalorder %s93, %s94
    %p105 = scmp.eq.s32.totalorder %s17, 0
    %p106 = por %p104, %p105
    %p107 = scmp.ne.s32.totalorder %s93, %s94
    %p108 = scmp.eq.s32.totalorder %s18, 1
    %p109 = por %p107, %p108
    %p111 = scmp.ne.s32.totalorder %s94, %s110
    %p112 = scmp.eq.s32.totalorder %s18, 0
    %p113 = por %p111, %p112
    %s115 = sadd.s32 %s114, 1
    %p118 = scmp.eq.s32.totalorder %s12, 1
    %p119 = scmp.ne.s32.totalorder %s114, %s116
    %p120 = scmp.eq.s32.totalorder %s12, 0
    %p121 = por %p119, %p120
    %p122 = scmp.ne.s32.totalorder %s114, %s116
    %p123 = scmp.eq.s32.totalorder %s17, 1
    %p124 = por %p122, %p123
    %p125 = scmp.ne.s32.totalorder %s116, %s117
    %p126 = scmp.eq.s32.totalorder %s17, 0
    %p127 = por %p125, %p126
    %p128 = scmp.ne.s32.totalorder %s116, %s117
    %p129 = scmp.eq.s32.totalorder %s18, 1
    %p130 = por %p128, %p129
    %p132 = scmp.ne.s32.totalorder %s117, %s131
    %p133 = scmp.eq.s32.totalorder %s18, 0
    %p134 = por %p132, %p133
    %s136 = sadd.s32 %s135, 1
    %p139 = scmp.eq.s32.totalorder %s12, 1
    %p140 = scmp.ne.s32.totalorder %s135, %s137
    %p141 = scmp.eq.s32.totalorder %s12, 0
    %p142 = por %p140, %p141
    %p143 = scmp.ne.s32.totalorder %s135, %s137
    %p144 = scmp.eq.s32.totalorder %s17, 1
    %p145 = por %p143, %p144
    %p146 = scmp.ne.s32.totalorder %s137, %s138
    %p147 = scmp.eq.s32.totalorder %s17, 0
    %p148 = por %p146, %p147
    %p149 = scmp.ne.s32.totalorder %s137, %s138
    %p150 = scmp.eq.s32.totalorder %s18, 1
    %p151 = por %p149, %p150
    %p153 = scmp.ne.s32.totalorder %s138, %s152
    %p154 = scmp.eq.s32.totalorder %s18, 0
    %p155 = por %p153, %p154
    %p156 = scmp.le.s32.totalorder 1, %s12
    %p157 = scmp.lt.s32.totalorder %s12, 3
    %p158 = pnand %p156, %p157
    %p159 = pneg %p158
    // Predicated region
    $region9: #{residual_block_forward.3} parent=5 // pred_check
      _
    $region10: #{residual_block_forward.3} parent=5 // pred_check_branch
      %161 = sbr.rel (%p158) target = $region12
    $region11: #{residual_block_forward.3} parent=5 // pred_region
      %s162 = ssub.s32 %s12, 1
      // Predicated region
      $region13: #{residual_block_forward.3} parent=11 // pred_check
        %p163 = pneg %p59
      $region14: #{residual_block_forward.3} parent=11 // pred_check_branch
        %165 = sbr.rel (%p163) target = $region16
      $region15: #{residual_block_forward.3} parent=11 // pred_region
        _
      $region16: #{residual_block_forward.3} parent=11 // pred_fallthru
        _
      // Predicated region
      $region17: #{residual_block_forward.3} parent=11 // pred_check
        %p166 = pneg %p80
      $region18: #{residual_block_forward.3} parent=11 // pred_check_branch
        %168 = sbr.rel (%p166) target = $region20
      $region19: #{residual_block_forward.3} parent=11 // pred_region
        _
      $region20: #{residual_block_forward.3} parent=11 // pred_fallthru
        _
    $region12: #{residual_block_forward.3} parent=5 // pred_fallthru
      _
    %p169 = scmp.lt.s32.totalorder %s12, 2
    // Predicated region
    $region21: #{residual_block_forward.3} parent=5 // pred_check
      %p170 = pneg %p169
    $region22: #{residual_block_forward.3} parent=5 // pred_check_branch
      %172 = sbr.rel (%p170) target = $region24
    $region23: #{residual_block_forward.3} parent=5 // pred_region
      // Predicated region
      $region25: #{residual_block_forward.3} parent=23 // pred_check
        %p173 = pneg %p32
      $region26: #{residual_block_forward.3} parent=23 // pred_check_branch
        %175 = sbr.rel (%p173) target = $region28
      $region27: #{residual_block_forward.3} parent=23 // pred_region
        %s176 = smul.u32 32, %s12
        %p177 = scmp.lt.s32.totalorder %s176, 63
        %s178 = scalar_select %p177, %s176, 63
        %s179 = smul.addr %s178, 8
        %s180 = scalar_lea.vmem %s0, %s179
        %s181 = smul.u32 32, %s12
      $region28: #{residual_block_forward.3} parent=23 // pred_fallthru
        _
    $region24: #{residual_block_forward.3} parent=5 // pred_fallthru
      _
    %p182 = scmp.le.s32.totalorder 1, %s12
    %p183 = scmp.lt.s32.totalorder %s12, 3
    %p184 = pnand %p182, %p183
    %p185 = pneg %p184
    // Predicated region
    $region29: #{residual_block_forward.3} parent=5 // pred_check
      _
    $region30: #{residual_block_forward.3} parent=5 // pred_check_branch
      %187 = sbr.rel (%p184) target = $region32
    $region31: #{residual_block_forward.3} parent=5 // pred_region
      %s188 = ssub.s32 %s12, 1
      %s189 = smul.u32 32, %s17
      %p190 = scmp.lt.s32.totalorder %s189, 63
      %s191 = scalar_select %p190, %s189, 63
      %s192 = smul.addr %s191, 8
      %s193 = scalar_lea.vmem %s0, %s192
      %p194 = pneg %p38
      %p195 = pneg %p35
      %p196 = pneg %p59
      %p197 = pneg %p56
      %p198 = pneg %p80
      %p199 = pneg %p77
      %p200 = pneg %p106
      %p201 = pneg %p103
      %s202 = smul.u32 32, %s17
      %p203 = scmp.lt.s32.totalorder %s202, 63
      %s204 = scalar_select %p203, %s202, 63
      %s205 = smul.addr %s204, 8
      %s206 = scalar_lea.vmem %s3, %s205
      %p207 = pneg %p127
      %p208 = pneg %p124
      %p209 = pneg %p148
      %p210 = pneg %p145
      %s211 = smul.u32 32, %s17
      %p212 = scmp.lt.s32.totalorder %s211, 63
      %s213 = scalar_select %p212, %s211, 63
      %s214 = smul.addr %s213, 8
      %s215 = scalar_lea.vmem %s0, %s214
      %s216 = smul.u32 32, %s17
      %s217 = smul.u32 32, %s17
      %p218 = scmp.lt.s32.totalorder %s217, 63
      %s219 = scalar_select %p218, %s217, 63
      %s220 = smul.addr %s219, 8
      %s221 = scalar_lea.vmem %s3, %s220
      %s222 = smul.u32 32, %s17
      %v223 = vld [vmem:[%s215] sm:$0xff]
      %v224 = vld [vmem:[%s215 + $0x8] sm:$0xff]
      %v225 = vld [vmem:[%s215 + $0x10] sm:$0xff]
      %v226 = vld [vmem:[%s215 + $0x18] sm:$0xff]
      %v227 = vld [vmem:[%s215 + $0x20] sm:$0xff]
      %v228 = vld [vmem:[%s215 + $0x28] sm:$0xff]
      %v229 = vld [vmem:[%s215 + $0x30] sm:$0xff]
      %v230 = vld [vmem:[%s215 + $0x38] sm:$0xff]
      %v231 = vld [vmem:[%s215 + $0x40] sm:$0xff]
      %v232 = vld [vmem:[%s215 + $0x48] sm:$0xff]
      %v233 = vld [vmem:[%s215 + $0x50] sm:$0xff]
      %v234 = vld [vmem:[%s215 + $0x58] sm:$0xff]
      %v235 = vld [vmem:[%s215 + $0x60] sm:$0xff]
      %v236 = vld [vmem:[%s215 + $0x68] sm:$0xff]
      %v237 = vld [vmem:[%s215 + $0x70] sm:$0xff]
      %v238 = vld [vmem:[%s215 + $0x78] sm:$0xff]
      %v239 = vld [vmem:[%s215 + $0x80] sm:$0xff]
      %v240 = vld [vmem:[%s215 + $0x88] sm:$0xff]
      %v241 = vld [vmem:[%s215 + $0x90] sm:$0xff]
      %v242 = vld [vmem:[%s215 + $0x98] sm:$0xff]
      %v243 = vld [vmem:[%s215 + $0xa0] sm:$0xff]
      %v244 = vld [vmem:[%s215 + $0xa8] sm:$0xff]
      %v245 = vld [vmem:[%s215 + $0xb0] sm:$0xff]
      %v246 = vld [vmem:[%s215 + $0xb8] sm:$0xff]
      %v247 = vld [vmem:[%s215 + $0xc0] sm:$0xff]
      %v248 = vld [vmem:[%s215 + $0xc8] sm:$0xff]
      %v249 = vld [vmem:[%s215 + $0xd0] sm:$0xff]
      %v250 = vld [vmem:[%s215 + $0xd8] sm:$0xff]
      %v251 = vld [vmem:[%s215 + $0xe0] sm:$0xff]
      %v252 = vld [vmem:[%s215 + $0xe8] sm:$0xff]
      %v253 = vld [vmem:[%s215 + $0xf0] sm:$0xff]
      %v254 = vld [vmem:[%s215 + $0xf8] sm:$0xff]
      %v255 = vld [vmem:[%s1] sm:$0xff]
      %v256 = vld [vmem:[%s1 + $0x8] sm:$0xff]
      %v257 = vld [vmem:[%s1 + $0x10] sm:$0xff]
      %v258 = vld [vmem:[%s1 + $0x18] sm:$0xff]
      %v259 = vld [vmem:[%s1 + $0x20] sm:$0xf]
      %v260 = vld [vmem:[%s2] sm:$0x1]
      %v262 = vlaneseq
      %v263 = vshrl.u32 %v262, 7
      %v264 = vsub.s32 0, %v263
      %v265 = vrot.slane %v260, %v264
      %vm267 = vcmask 293888
      %v269 = vsel %vm267, %v223, 0
      %v272 = vsel %vm267, %v224, 0
      %v275 = vsel %vm267, %v225, 0
      %v278 = vsel %vm267, %v226, 0
      %v281 = vsel %vm267, %v227, 0
      %v284 = vsel %vm267, %v228, 0
      %v287 = vsel %vm267, %v229, 0
      %v290 = vsel %vm267, %v230, 0
      %v293 = vsel %vm267, %v231, 0
      %v296 = vsel %vm267, %v232, 0
      %v299 = vsel %vm267, %v233, 0
      %v302 = vsel %vm267, %v234, 0
      %v305 = vsel %vm267, %v235, 0
      %v308 = vsel %vm267, %v236, 0
      %v311 = vsel %vm267, %v237, 0
      %v314 = vsel %vm267, %v238, 0
      %v317 = vsel %vm267, %v239, 0
      %v320 = vsel %vm267, %v240, 0
      %v323 = vsel %vm267, %v241, 0
      %v326 = vsel %vm267, %v242, 0
      %v329 = vsel %vm267, %v243, 0
      %v332 = vsel %vm267, %v244, 0
      %v335 = vsel %vm267, %v245, 0
      %v338 = vsel %vm267, %v246, 0
      %v341 = vsel %vm267, %v247, 0
      %v344 = vsel %vm267, %v248, 0
      %v347 = vsel %vm267, %v249, 0
      %v350 = vsel %vm267, %v250, 0
      %v353 = vsel %vm267, %v251, 0
      %v356 = vsel %vm267, %v252, 0
      %v359 = vsel %vm267, %v253, 0
      %v362 = vsel %vm267, %v254, 0
      %vm364 = vcmask 1043456
      %v366 = vsel %vm364, %v259, 0
      %368 = vmatprep.subr.mxu0 0.0
      %369 = vmatpush1.msra.mxu0 0.0
      %370 = vmatprep.subr.mxu0 0.0
      %371 = vmatpush1.msra.mxu0 0.0
      %372 = vmatprep.subr.mxu0 0.0
      %373 = vmatpush1.msra.mxu0 0.0
      %374 = vmatprep.subr.mxu0 0.0
      %375 = vmatpush1.msra.mxu0 0.0
      %376 = vmatprep.subr.mxu0 0.0
      %377 = vmatpush1.msra.mxu0 0.0
      %378 = vmatprep.subr.mxu0 0.0
      %379 = vmatpush1.msra.mxu0 0.0
      %380 = vmatprep.subr.mxu0 0.0
      %381 = vmatpush1.msra.mxu0 0.0
      %382 = vmatprep.subr.mxu0 0.0
      %383 = vmatpush1.msra.mxu0 0.0
      %384 = vmatprep.subr.mxu0 0.0
      %385 = vmatpush1.msra.mxu0 0.0
      %386 = vmatprep.subr.mxu0 0.0
      %387 = vmatpush1.msra.mxu0 0.0
      %388 = vmatprep.subr.mxu0 0.0
      %389 = vmatpush1.msra.mxu0 0.0
      %390 = vmatprep.subr.mxu0 0.0
      %391 = vmatpush1.msra.mxu0 %v366
      %392 = vmatprep.subr.mxu0 0.0
      %393 = vmatpush1.msra.mxu0 %v258
      %394 = vmatprep.subr.mxu0 0.0
      %395 = vmatpush1.msra.mxu0 %v257
      %396 = vmatprep.subr.mxu0 0.0
      %397 = vmatpush1.msra.mxu0 %v256
      %398 = vmatprep.subr.mxu0 0.0
      %399 = vmatpush1.msra.mxu0 %v255
      %400 = vmatprep.subr.mxu0 0.0
      %401 = vmatpush2.msra.mxu0 0.0
      %402 = vmatprep.subr.mxu0 0.0
      %403 = vmatpush2.msra.mxu0 0.0
      %404 = vmatprep.subr.mxu0 0.0
      %405 = vmatpush2.msra.mxu0 0.0
      %406 = vmatprep.subr.mxu0 0.0
      %407 = vmatpush2.msra.mxu0 0.0
      %408 = vmatprep.subr.mxu0 0.0
      %409 = vmatpush2.msra.mxu0 0.0
      %410 = vmatprep.subr.mxu0 0.0
      %411 = vmatpush2.msra.mxu0 0.0
      %412 = vmatprep.subr.mxu0 0.0
      %413 = vmatpush2.msra.mxu0 0.0
      %414 = vmatprep.subr.mxu0 0.0
      %415 = vmatpush2.msra.mxu0 0.0
      %416 = vmatprep.subr.mxu0 0.0
      %417 = vmatpush2.msra.mxu0 0.0
      %418 = vmatprep.subr.mxu0 0.0
      %419 = vmatpush2.msra.mxu0 0.0
      %420 = vmatprep.subr.mxu0 0.0
      %421 = vmatpush2.msra.mxu0 0.0
      %422 = vmatprep.subr.mxu0 0.0
      %423 = vmatpush2.msra.mxu0 0.0
      %424 = vmatprep.subr.mxu0 0.0
      %425 = vmatpush2.msra.mxu0 0.0
      %426 = vmatprep.subr.mxu0 0.0
      %427 = vmatpush2.msra.mxu0 0.0
      %428 = vmatprep.subr.mxu0 0.0
      %429 = vmatpush2.msra.mxu0 0.0
      %430 = vmatprep.subr.mxu0 0.0
      %431 = vmatpush2.msra.mxu0 0.0
      %432 = vmatprep.mubr.f32.mxu0 0.0
      %433 = vmatmul.mubr.f32.gmra.mxu0 %v269
      %v434 = vpop.f32.mrf.mxu0
      %v435 = vadd.f32 %v265, %v434
      %v436 = vpop.f32.mrf.mxu0
      %437 = vmatprep.mubr.f32.mxu0 0.0
      %438 = vmatmul.mubr.f32.gmra.mxu0 %v272
      %v439 = vpop.f32.mrf.mxu0
      %v440 = vadd.f32 %v265, %v439
      %v441 = vpop.f32.mrf.mxu0
      %442 = vmatprep.mubr.f32.mxu0 0.0
      %443 = vmatmul.mubr.f32.gmra.mxu0 %v275
      %v444 = vpop.f32.mrf.mxu0
      %v445 = vadd.f32 %v265, %v444
      %v446 = vpop.f32.mrf.mxu0
      %447 = vmatprep.mubr.f32.mxu0 0.0
      %448 = vmatmul.mubr.f32.gmra.mxu0 %v278
      %v449 = vpop.f32.mrf.mxu0
      %v450 = vadd.f32 %v265, %v449
      %v451 = vpop.f32.mrf.mxu0
      %452 = vmatprep.mubr.f32.mxu0 0.0
      %453 = vmatmul.mubr.f32.gmra.mxu0 %v281
      %v454 = vpop.f32.mrf.mxu0
      %v455 = vadd.f32 %v265, %v454
      %v456 = vpop.f32.mrf.mxu0
      %457 = vmatprep.mubr.f32.mxu0 0.0
      %458 = vmatmul.mubr.f32.gmra.mxu0 %v284
      %v459 = vpop.f32.mrf.mxu0
      %v460 = vadd.f32 %v265, %v459
      %v461 = vpop.f32.mrf.mxu0
      %462 = vmatprep.mubr.f32.mxu0 0.0
      %463 = vmatmul.mubr.f32.gmra.mxu0 %v287
      %v464 = vpop.f32.mrf.mxu0
      %v465 = vadd.f32 %v265, %v464
      %v466 = vpop.f32.mrf.mxu0
      %467 = vmatprep.mubr.f32.mxu0 0.0
      %468 = vmatmul.mubr.f32.gmra.mxu0 %v290
      %v469 = vpop.f32.mrf.mxu0
      %v470 = vadd.f32 %v265, %v469
      %v471 = vpop.f32.mrf.mxu0
      %472 = vmatprep.mubr.f32.mxu0 0.0
      %473 = vmatmul.mubr.f32.gmra.mxu0 %v293
      %v474 = vpop.f32.mrf.mxu0
      %v475 = vadd.f32 %v265, %v474
      %v476 = vpop.f32.mrf.mxu0
      %477 = vmatprep.mubr.f32.mxu0 0.0
      %478 = vmatmul.mubr.f32.gmra.mxu0 %v296
      %v479 = vpop.f32.mrf.mxu0
      %v480 = vadd.f32 %v265, %v479
      %v481 = vpop.f32.mrf.mxu0
      %482 = vmatprep.mubr.f32.mxu0 0.0
      %483 = vmatmul.mubr.f32.gmra.mxu0 %v299
      %v484 = vpop.f32.mrf.mxu0
      %v485 = vadd.f32 %v265, %v484
      %v486 = vpop.f32.mrf.mxu0
      %487 = vmatprep.mubr.f32.mxu0 0.0
      %488 = vmatmul.mubr.f32.gmra.mxu0 %v302
      %v489 = vpop.f32.mrf.mxu0
      %v490 = vadd.f32 %v265, %v489
      %v491 = vpop.f32.mrf.mxu0
      %492 = vmatprep.mubr.f32.mxu0 0.0
      %493 = vmatmul.mubr.f32.gmra.mxu0 %v305
      %v494 = vpop.f32.mrf.mxu0
      %v495 = vadd.f32 %v265, %v494
      %v496 = vpop.f32.mrf.mxu0
      %497 = vmatprep.mubr.f32.mxu0 0.0
      %498 = vmatmul.mubr.f32.gmra.mxu0 %v308
      %v499 = vpop.f32.mrf.mxu0
      %v500 = vadd.f32 %v265, %v499
      %v501 = vpop.f32.mrf.mxu0
      %502 = vmatprep.mubr.f32.mxu0 0.0
      %503 = vmatmul.mubr.f32.gmra.mxu0 %v311
      %v504 = vpop.f32.mrf.mxu0
      %v505 = vadd.f32 %v265, %v504
      %v506 = vpop.f32.mrf.mxu0
      %507 = vmatprep.mubr.f32.mxu0 0.0
      %508 = vmatmul.mubr.f32.gmra.mxu0 %v314
      %v509 = vpop.f32.mrf.mxu0
      %v510 = vadd.f32 %v265, %v509
      %v511 = vpop.f32.mrf.mxu0
      %512 = vmatprep.mubr.f32.mxu0 0.0
      %513 = vmatmul.mubr.f32.gmra.mxu0 %v317
      %v514 = vpop.f32.mrf.mxu0
      %v515 = vadd.f32 %v265, %v514
      %v516 = vpop.f32.mrf.mxu0
      %517 = vmatprep.mubr.f32.mxu0 0.0
      %518 = vmatmul.mubr.f32.gmra.mxu0 %v320
      %v519 = vpop.f32.mrf.mxu0
      %v520 = vadd.f32 %v265, %v519
      %v521 = vpop.f32.mrf.mxu0
      %522 = vmatprep.mubr.f32.mxu0 0.0
      %523 = vmatmul.mubr.f32.gmra.mxu0 %v323
      %v524 = vpop.f32.mrf.mxu0
      %v525 = vadd.f32 %v265, %v524
      %v526 = vpop.f32.mrf.mxu0
      %527 = vmatprep.mubr.f32.mxu0 0.0
      %528 = vmatmul.mubr.f32.gmra.mxu0 %v326
      %v529 = vpop.f32.mrf.mxu0
      %v530 = vadd.f32 %v265, %v529
      %v531 = vpop.f32.mrf.mxu0
      %532 = vmatprep.mubr.f32.mxu0 0.0
      %533 = vmatmul.mubr.f32.gmra.mxu0 %v329
      %v534 = vpop.f32.mrf.mxu0
      %v535 = vadd.f32 %v265, %v534
      %v536 = vpop.f32.mrf.mxu0
      %537 = vmatprep.mubr.f32.mxu0 0.0
      %538 = vmatmul.mubr.f32.gmra.mxu0 %v332
      %v539 = vpop.f32.mrf.mxu0
      %v540 = vadd.f32 %v265, %v539
      %v541 = vpop.f32.mrf.mxu0
      %542 = vmatprep.mubr.f32.mxu0 0.0
      %543 = vmatmul.mubr.f32.gmra.mxu0 %v335
      %v544 = vpop.f32.mrf.mxu0
      %v545 = vadd.f32 %v265, %v544
      %v546 = vpop.f32.mrf.mxu0
      %547 = vmatprep.mubr.f32.mxu0 0.0
      %548 = vmatmul.mubr.f32.gmra.mxu0 %v338
      %v549 = vpop.f32.mrf.mxu0
      %v550 = vadd.f32 %v265, %v549
      %v551 = vpop.f32.mrf.mxu0
      %552 = vmatprep.mubr.f32.mxu0 0.0
      %553 = vmatmul.mubr.f32.gmra.mxu0 %v341
      %v554 = vpop.f32.mrf.mxu0
      %v555 = vadd.f32 %v265, %v554
      %v556 = vpop.f32.mrf.mxu0
      %557 = vmatprep.mubr.f32.mxu0 0.0
      %558 = vmatmul.mubr.f32.gmra.mxu0 %v344
      %v559 = vpop.f32.mrf.mxu0
      %v560 = vadd.f32 %v265, %v559
      %v561 = vpop.f32.mrf.mxu0
      %562 = vmatprep.mubr.f32.mxu0 0.0
      %563 = vmatmul.mubr.f32.gmra.mxu0 %v347
      %v564 = vpop.f32.mrf.mxu0
      %v565 = vadd.f32 %v265, %v564
      %v566 = vpop.f32.mrf.mxu0
      %567 = vmatprep.mubr.f32.mxu0 0.0
      %568 = vmatmul.mubr.f32.gmra.mxu0 %v350
      %v569 = vpop.f32.mrf.mxu0
      %v570 = vadd.f32 %v265, %v569
      %v571 = vpop.f32.mrf.mxu0
      %572 = vmatprep.mubr.f32.mxu0 0.0
      %573 = vmatmul.mubr.f32.gmra.mxu0 %v353
      %v574 = vpop.f32.mrf.mxu0
      %v575 = vadd.f32 %v265, %v574
      %v576 = vpop.f32.mrf.mxu0
      %577 = vmatprep.mubr.f32.mxu0 0.0
      %578 = vmatmul.mubr.f32.gmra.mxu0 %v356
      %v579 = vpop.f32.mrf.mxu0
      %v580 = vadd.f32 %v265, %v579
      %v581 = vpop.f32.mrf.mxu0
      %582 = vmatprep.mubr.f32.mxu0 0.0
      %583 = vmatmul.mubr.f32.gmra.mxu0 %v359
      %v584 = vpop.f32.mrf.mxu0
      %v585 = vadd.f32 %v265, %v584
      %v586 = vpop.f32.mrf.mxu0
      %587 = vmatprep.mubr.f32.mxu0 0.0
      %588 = vmatmul.mubr.f32.gmra.mxu0 %v362
      %v589 = vpop.f32.mrf.mxu0
      %v590 = vadd.f32 %v265, %v589
      %v591 = vpop.f32.mrf.mxu0
      %592 = vdwg.mxu0
      %vm593 = vcmask 31744
      %594 = vst.msk [vmem:[%s221] sm:$0xff] %vm593, %v435
      %595 = vst.msk [vmem:[%s221 + $0x8] sm:$0xff] %vm593, %v440
      %596 = vst.msk [vmem:[%s221 + $0x10] sm:$0xff] %vm593, %v445
      %597 = vst.msk [vmem:[%s221 + $0x18] sm:$0xff] %vm593, %v450
      %598 = vst.msk [vmem:[%s221 + $0x20] sm:$0xff] %vm593, %v455
      %599 = vst.msk [vmem:[%s221 + $0x28] sm:$0xff] %vm593, %v460
      %600 = vst.msk [vmem:[%s221 + $0x30] sm:$0xff] %vm593, %v465
      %601 = vst.msk [vmem:[%s221 + $0x38] sm:$0xff] %vm593, %v470
      %602 = vst.msk [vmem:[%s221 + $0x40] sm:$0xff] %vm593, %v475
      %603 = vst.msk [vmem:[%s221 + $0x48] sm:$0xff] %vm593, %v480
      %604 = vst.msk [vmem:[%s221 + $0x50] sm:$0xff] %vm593, %v485
      %605 = vst.msk [vmem:[%s221 + $0x58] sm:$0xff] %vm593, %v490
      %606 = vst.msk [vmem:[%s221 + $0x60] sm:$0xff] %vm593, %v495
      %607 = vst.msk [vmem:[%s221 + $0x68] sm:$0xff] %vm593, %v500
      %608 = vst.msk [vmem:[%s221 + $0x70] sm:$0xff] %vm593, %v505
      %609 = vst.msk [vmem:[%s221 + $0x78] sm:$0xff] %vm593, %v510
      %610 = vst.msk [vmem:[%s221 + $0x80] sm:$0xff] %vm593, %v515
      %611 = vst.msk [vmem:[%s221 + $0x88] sm:$0xff] %vm593, %v520
      %612 = vst.msk [vmem:[%s221 + $0x90] sm:$0xff] %vm593, %v525
      %613 = vst.msk [vmem:[%s221 + $0x98] sm:$0xff] %vm593, %v530
      %614 = vst.msk [vmem:[%s221 + $0xa0] sm:$0xff] %vm593, %v535
      %615 = vst.msk [vmem:[%s221 + $0xa8] sm:$0xff] %vm593, %v540
      %616 = vst.msk [vmem:[%s221 + $0xb0] sm:$0xff] %vm593, %v545
      %617 = vst.msk [vmem:[%s221 + $0xb8] sm:$0xff] %vm593, %v550
      %618 = vst.msk [vmem:[%s221 + $0xc0] sm:$0xff] %vm593, %v555
      %619 = vst.msk [vmem:[%s221 + $0xc8] sm:$0xff] %vm593, %v560
      %620 = vst.msk [vmem:[%s221 + $0xd0] sm:$0xff] %vm593, %v565
      %621 = vst.msk [vmem:[%s221 + $0xd8] sm:$0xff] %vm593, %v570
      %622 = vst.msk [vmem:[%s221 + $0xe0] sm:$0xff] %vm593, %v575
      %623 = vst.msk [vmem:[%s221 + $0xe8] sm:$0xff] %vm593, %v580
      %624 = vst.msk [vmem:[%s221 + $0xf0] sm:$0xff] %vm593, %v585
      %625 = vst.msk [vmem:[%s221 + $0xf8] sm:$0xff] %vm593, %v590
      %p626 = scmp.eq.s32.totalorder %s17, 0
      // Predicated region
      $region33: #{residual_block_forward.3} parent=31 // pred_check
        %p627 = pneg %p626
      $region34: #{residual_block_forward.3} parent=31 // pred_check_branch
        %629 = sbr.rel (%p627) target = $region36
      $region35: #{residual_block_forward.3} parent=31 // pred_region
        %vm630 = vcmask 24576
        %631 = vst.msk [vmem:[%s4] sm:$0x1] %vm630, 0.0
        %632 = vst.msk [vmem:[%s5] sm:$0x1] %vm630, 0.0
      $region36: #{residual_block_forward.3} parent=31 // pred_fallthru
        _
      %v633 = vld [vmem:[%s4] sm:$0x1]
      %v634 = vsel %vm593, %v435, 0.0
      %v635 = vsel %vm593, %v440, 0.0
      %v636 = vadd.f32 %v634, %v635
      %v637 = vsel %vm593, %v445, 0.0
      %v638 = vadd.f32 %v636, %v637
      %v639 = vsel %vm593, %v450, 0.0
      %v640 = vadd.f32 %v638, %v639
      %v641 = vsel %vm593, %v455, 0.0
      %v642 = vadd.f32 %v640, %v641
      %v643 = vsel %vm593, %v460, 0.0
      %v644 = vadd.f32 %v642, %v643
      %v645 = vsel %vm593, %v465, 0.0
      %v646 = vadd.f32 %v644, %v645
      %v647 = vsel %vm593, %v470, 0.0
      %v648 = vadd.f32 %v646, %v647
      %v649 = vsel %vm593, %v475, 0.0
      %v650 = vadd.f32 %v648, %v649
      %v651 = vsel %vm593, %v480, 0.0
      %v652 = vadd.f32 %v650, %v651
      %v653 = vsel %vm593, %v485, 0.0
      %v654 = vadd.f32 %v652, %v653
      %v655 = vsel %vm593, %v490, 0.0
      %v656 = vadd.f32 %v654, %v655
      %v657 = vsel %vm593, %v495, 0.0
      %v658 = vadd.f32 %v656, %v657
      %v659 = vsel %vm593, %v500, 0.0
      %v660 = vadd.f32 %v658, %v659
      %v661 = vsel %vm593, %v505, 0.0
      %v662 = vadd.f32 %v660, %v661
      %v663 = vsel %vm593, %v510, 0.0
      %v664 = vadd.f32 %v662, %v663
      %v665 = vsel %vm593, %v515, 0.0
      %v666 = vadd.f32 %v664, %v665
      %v667 = vsel %vm593, %v520, 0.0
      %v668 = vadd.f32 %v666, %v667
      %v669 = vsel %vm593, %v525, 0.0
      %v670 = vadd.f32 %v668, %v669
      %v671 = vsel %vm593, %v530, 0.0
      %v672 = vadd.f32 %v670, %v671
      %v673 = vsel %vm593, %v535, 0.0
      %v674 = vadd.f32 %v672, %v673
      %v675 = vsel %vm593, %v540, 0.0
      %v676 = vadd.f32 %v674, %v675
      %v677 = vsel %vm593, %v545, 0.0
      %v678 = vadd.f32 %v676, %v677
      %v679 = vsel %vm593, %v550, 0.0
      %v680 = vadd.f32 %v678, %v679
      %v681 = vsel %vm593, %v555, 0.0
      %v682 = vadd.f32 %v680, %v681
      %v683 = vsel %vm593, %v560, 0.0
      %v684 = vadd.f32 %v682, %v683
      %v685 = vsel %vm593, %v565, 0.0
      %v686 = vadd.f32 %v684, %v685
      %v687 = vsel %vm593, %v570, 0.0
      %v688 = vadd.f32 %v686, %v687
      %v689 = vsel %vm593, %v575, 0.0
      %v690 = vadd.f32 %v688, %v689
      %v691 = vsel %vm593, %v580, 0.0
      %v692 = vadd.f32 %v690, %v691
      %v693 = vsel %vm593, %v585, 0.0
      %v694 = vadd.f32 %v692, %v693
      %v695 = vsel %vm593, %v590, 0.0
      %v696 = vadd.f32 %v694, %v695
      %v697 = vrot.slane %v696, 4
      %v698 = vadd.f32 %v696, %v697
      %v699 = vrot.slane %v698, 2
      %v700 = vadd.f32 %v698, %v699
      %v701 = vrot.slane %v700, 1
      %v702 = vadd.f32 %v700, %v701
      %v703 = vadd.f32 %v633, %v702
      %vm704 = vcmask 24576
      %705 = vst.msk [vmem:[%s4] sm:$0x1] %vm704, %v703
      %v706 = vld [vmem:[%s5] sm:$0x1]
      %v707 = vmul.f32 %v435, %v435
      %v708 = vmul.f32 %v440, %v440
      %v709 = vmul.f32 %v445, %v445
      %v710 = vmul.f32 %v450, %v450
      %v711 = vmul.f32 %v455, %v455
      %v712 = vmul.f32 %v460, %v460
      %v713 = vmul.f32 %v465, %v465
      %v714 = vmul.f32 %v470, %v470
      %v715 = vmul.f32 %v475, %v475
      %v716 = vmul.f32 %v480, %v480
      %v717 = vmul.f32 %v485, %v485
      %v718 = vmul.f32 %v490, %v490
      %v719 = vmul.f32 %v495, %v495
      %v720 = vmul.f32 %v500, %v500
      %v721 = vmul.f32 %v505, %v505
      %v722 = vmul.f32 %v510, %v510
      %v723 = vmul.f32 %v515, %v515
      %v724 = vmul.f32 %v520, %v520
      %v725 = vmul.f32 %v525, %v525
      %v726 = vmul.f32 %v530, %v530
      %v727 = vmul.f32 %v535, %v535
      %v728 = vmul.f32 %v540, %v540
      %v729 = vmul.f32 %v545, %v545
      %v730 = vmul.f32 %v550, %v550
      %v731 = vmul.f32 %v555, %v555
      %v732 = vmul.f32 %v560, %v560
      %v733 = vmul.f32 %v565, %v565
      %v734 = vmul.f32 %v570, %v570
      %v735 = vmul.f32 %v575, %v575
      %v736 = vmul.f32 %v580, %v580
      %v737 = vmul.f32 %v585, %v585
      %v738 = vmul.f32 %v590, %v590
      %v739 = vsel %vm593, %v707, 0.0
      %v740 = vsel %vm593, %v708, 0.0
      %v741 = vadd.f32 %v739, %v740
      %v742 = vsel %vm593, %v709, 0.0
      %v743 = vadd.f32 %v741, %v742
      %v744 = vsel %vm593, %v710, 0.0
      %v745 = vadd.f32 %v743, %v744
      %v746 = vsel %vm593, %v711, 0.0
      %v747 = vadd.f32 %v745, %v746
      %v748 = vsel %vm593, %v712, 0.0
      %v749 = vadd.f32 %v747, %v748
      %v750 = vsel %vm593, %v713, 0.0
      %v751 = vadd.f32 %v749, %v750
      %v752 = vsel %vm593, %v714, 0.0
      %v753 = vadd.f32 %v751, %v752
      %v754 = vsel %vm593, %v715, 0.0
      %v755 = vadd.f32 %v753, %v754
      %v756 = vsel %vm593, %v716, 0.0
      %v757 = vadd.f32 %v755, %v756
      %v758 = vsel %vm593, %v717, 0.0
      %v759 = vadd.f32 %v757, %v758
      %v760 = vsel %vm593, %v718, 0.0
      %v761 = vadd.f32 %v759, %v760
      %v762 = vsel %vm593, %v719, 0.0
      %v763 = vadd.f32 %v761, %v762
      %v764 = vsel %vm593, %v720, 0.0
      %v765 = vadd.f32 %v763, %v764
      %v766 = vsel %vm593, %v721, 0.0
      %v767 = vadd.f32 %v765, %v766
      %v768 = vsel %vm593, %v722, 0.0
      %v769 = vadd.f32 %v767, %v768
      %v770 = vsel %vm593, %v723, 0.0
      %v771 = vadd.f32 %v769, %v770
      %v772 = vsel %vm593, %v724, 0.0
      %v773 = vadd.f32 %v771, %v772
      %v774 = vsel %vm593, %v725, 0.0
      %v775 = vadd.f32 %v773, %v774
      %v776 = vsel %vm593, %v726, 0.0
      %v777 = vadd.f32 %v775, %v776
      %v778 = vsel %vm593, %v727, 0.0
      %v779 = vadd.f32 %v777, %v778
      %v780 = vsel %vm593, %v728, 0.0
      %v781 = vadd.f32 %v779, %v780
      %v782 = vsel %vm593, %v729, 0.0
      %v783 = vadd.f32 %v781, %v782
      %v784 = vsel %vm593, %v730, 0.0
      %v785 = vadd.f32 %v783, %v784
      %v786 = vsel %vm593, %v731, 0.0
      %v787 = vadd.f32 %v785, %v786
      %v788 = vsel %vm593, %v732, 0.0
      %v789 = vadd.f32 %v787, %v788
      %v790 = vsel %vm593, %v733, 0.0
      %v791 = vadd.f32 %v789, %v790
      %v792 = vsel %vm593, %v734, 0.0
      %v793 = vadd.f32 %v791, %v792
      %v794 = vsel %vm593, %v735, 0.0
      %v795 = vadd.f32 %v793, %v794
      %v796 = vsel %vm593, %v736, 0.0
      %v797 = vadd.f32 %v795, %v796
      %v798 = vsel %vm593, %v737, 0.0
      %v799 = vadd.f32 %v797, %v798
      %v800 = vsel %vm593, %v738, 0.0
      %v801 = vadd.f32 %v799, %v800
      %v802 = vrot.slane %v801, 4
      %v803 = vadd.f32 %v801, %v802
      %v804 = vrot.slane %v803, 2
      %v805 = vadd.f32 %v803, %v804
      %v806 = vrot.slane %v805, 1
      %v807 = vadd.f32 %v805, %v806
      %v808 = vadd.f32 %v706, %v807
      %809 = vst.msk [vmem:[%s5] sm:$0x1] %vm704, %v808
      %s810 = smul.u32 32, %s17
      %p811 = scmp.lt.s32.totalorder %s810, 63
      %s812 = scalar_select %p811, %s810, 63
      %s813 = smul.addr %s812, 8
      %s814 = scalar_lea.vmem %s3, %s813
      // Predicated region
      $region37: #{residual_block_forward.3} parent=31 // pred_check
        %p815 = pneg %p103
      $region38: #{residual_block_forward.3} parent=31 // pred_check_branch
        %817 = sbr.rel (%p815) target = $region40
      $region39: #{residual_block_forward.3} parent=31 // pred_region
        %s818 = smul.u32 32, %s17
      $region40: #{residual_block_forward.3} parent=31 // pred_fallthru
        _
      // Predicated region
      $region41: #{residual_block_forward.3} parent=31 // pred_check
        %p819 = pneg %p124
      $region42: #{residual_block_forward.3} parent=31 // pred_check_branch
        %821 = sbr.rel (%p819) target = $region44
      $region43: #{residual_block_forward.3} parent=31 // pred_region
        _
      $region44: #{residual_block_forward.3} parent=31 // pred_fallthru
        _
      // Predicated region
      $region45: #{residual_block_forward.3} parent=31 // pred_check
        %p822 = pneg %p145
      $region46: #{residual_block_forward.3} parent=31 // pred_check_branch
        %824 = sbr.rel (%p822) target = $region48
      $region47: #{residual_block_forward.3} parent=31 // pred_region
        _
      $region48: #{residual_block_forward.3} parent=31 // pred_fallthru
        _
      // Predicated region
      $region49: #{residual_block_forward.3} parent=31 // pred_check
        %p825 = pneg %p124
      $region50: #{residual_block_forward.3} parent=31 // pred_check_branch
        %827 = sbr.rel (%p825) target = $region52
      $region51: #{residual_block_forward.3} parent=31 // pred_region
        _
      $region52: #{residual_block_forward.3} parent=31 // pred_fallthru
        _
      // Predicated region
      $region53: #{residual_block_forward.3} parent=31 // pred_check
        %p828 = pneg %p145
      $region54: #{residual_block_forward.3} parent=31 // pred_check_branch
        %830 = sbr.rel (%p828) target = $region56
      $region55: #{residual_block_forward.3} parent=31 // pred_region
        _
      $region56: #{residual_block_forward.3} parent=31 // pred_fallthru
        _
    $region32: #{residual_block_forward.3} parent=5 // pred_fallthru
      _
    %p831 = scmp.le.s32.totalorder 2, %s12
    // Predicated region
    $region57: #{residual_block_forward.3} parent=5 // pred_check
      %p832 = pneg %p831
    $region58: #{residual_block_forward.3} parent=5 // pred_check_branch
      %834 = sbr.rel (%p832) target = $region60
    $region59: #{residual_block_forward.3} parent=5 // pred_region
      %s835 = ssub.s32 %s12, 2
      // Predicated region
      $region61: #{residual_block_forward.3} parent=59 // pred_check
        %p836 = pneg %p109
      $region62: #{residual_block_forward.3} parent=59 // pred_check_branch
        %838 = sbr.rel (%p836) target = $region64
      $region63: #{residual_block_forward.3} parent=59 // pred_region
        %s839 = smul.u32 32, %s18
        %p840 = scmp.lt.s32.totalorder %s839, 63
        %s841 = scalar_select %p840, %s839, 63
        %s842 = smul.addr %s841, 8
        %s843 = scalar_lea.vmem %s3, %s842
      $region64: #{residual_block_forward.3} parent=59 // pred_fallthru
        _
    $region60: #{residual_block_forward.3} parent=5 // pred_fallthru
      _
  $region6: #{residual_block_forward.3} parent=0 // loop_footer
    %s16 = sadd.s32 1, %s12
  $region7: #{residual_block_forward.3} parent=0 // loop_footer_branch
    %11 = sbr.rel target = $region3
  $region8: #{residual_block_forward.3} parent=0 // loop_exit
    _

// kernel: residual_block_forward.5
$region0: #{residual_block_forward.5}
  #allocation0 [shape = 'u32[]', space=smem, size = 0x4, offset = 0x4, fixed_abs, tag = 'smem constant byte address 0x4 - core index']
  #allocation1 [shape = 'u32[144,128]{1,0:T(1,128)}', space=vmem, size = 0x12000, scoped, tag = 'internal scratch']
  %s0 = inlined_call_operand.vmem [shape: f32[9,72,4], index: 0, kind: input, shape index: {}]
  %s1 = inlined_call_operand.vmem [shape: f32[9,72,4], index: 1, kind: input, shape index: {}]
  %s2 = inlined_call_operand.vmem [shape: f32[9,72,1], index: 2, kind: input, shape index: {}]
  %s3 = inlined_call_operand.vmem [shape: f32[1,4], index: 3, kind: input, shape index: {}]
  %s4 = inlined_call_operand.vmem [shape: f32[1,4], index: 4, kind: input, shape index: {}]
  %s5 = inlined_call_operand.vmem [shape: f32[72,4], index: 5, kind: output, shape index: {0}]
  %s6 = inlined_call_operand.vmem [shape: f32[72,4], index: 6, kind: output, shape index: {1}]
  %7 = xla_tuple %s5, %s6
  %s8 = sld [smem:[#allocation0]]
  $region38: #{residual_block_forward.5} parent=0
    _
  %s10 = ssub.s32 1, %s8
  %s11 = scalar_select 0, %s10, %s8
  // Predicated region
  $region2: #{residual_block_forward.5} parent=0 // pred_check
    _
  $region3: #{residual_block_forward.5} parent=0 // pred_check_branch
    %13 = sbr.rel (0) target = $region5
  $region4: #{residual_block_forward.5} parent=0 // pred_region
    _
  $region5: #{residual_block_forward.5} parent=0 // pred_fallthru
    _
  // Predicated region
  $region6: #{residual_block_forward.5} parent=0 // pred_check
    _
  $region7: #{residual_block_forward.5} parent=0 // pred_check_branch
    %15 = sbr.rel (0) target = $region9
  $region8: #{residual_block_forward.5} parent=0 // pred_region
    _
  $region9: #{residual_block_forward.5} parent=0 // pred_fallthru
    _
  // Predicated region
  $region10: #{residual_block_forward.5} parent=0 // pred_check
    _
  $region11: #{residual_block_forward.5} parent=0 // pred_check_branch
    %17 = sbr.rel (0) target = $region13
  $region12: #{residual_block_forward.5} parent=0 // pred_region
    _
  $region13: #{residual_block_forward.5} parent=0 // pred_fallthru
    _
  // Predicated region
  $region14: #{residual_block_forward.5} parent=0 // pred_check
    _
  $region15: #{residual_block_forward.5} parent=0 // pred_check_branch
    %19 = sbr.rel (0) target = $region17
  $region16: #{residual_block_forward.5} parent=0 // pred_region
    _
  $region17: #{residual_block_forward.5} parent=0 // pred_fallthru
    _
  // Predicated region
  $region18: #{residual_block_forward.5} parent=0 // pred_check
    _
  $region19: #{residual_block_forward.5} parent=0 // pred_check_branch
    %21 = sbr.rel (0) target = $region21
  $region20: #{residual_block_forward.5} parent=0 // pred_region
    _
  $region21: #{residual_block_forward.5} parent=0 // pred_fallthru
    _
  %v22 = vld [vmem:[%s3] sm:$0x1]
  %v23 = vld [vmem:[%s4] sm:$0x1]
  %v24 = vld [vmem:[%s0] sm:$0xff]
  %v25 = vld [vmem:[%s0 + $0x8] sm:$0xff]
  %v26 = vld [vmem:[%s0 + $0x10] sm:$0xff]
  %v27 = vld [vmem:[%s0 + $0x18] sm:$0xff]
  %v28 = vld [vmem:[%s0 + $0x20] sm:$0xff]
  %v29 = vld [vmem:[%s0 + $0x28] sm:$0xff]
  %v30 = vld [vmem:[%s0 + $0x30] sm:$0xff]
  %v31 = vld [vmem:[%s0 + $0x38] sm:$0xff]
  %v32 = vld [vmem:[%s0 + $0x40] sm:$0xff]
  %v34 = vlaneseq
  %v35 = vshrl.u32 %v34, 7
  %v36 = vsub.s32 0, %v35
  %v37 = vrot.slane %v22, %v36
  %v39 = vmul.f32 %v24, %v37
  %v40 = vmul.f32 %v25, %v37
  %v41 = vmul.f32 %v26, %v37
  %v42 = vmul.f32 %v27, %v37
  %v43 = vmul.f32 %v28, %v37
  %v44 = vmul.f32 %v29, %v37
  %v45 = vmul.f32 %v30, %v37
  %v46 = vmul.f32 %v31, %v37
  %v47 = vmul.f32 %v32, %v37
  %v49 = vlaneseq
  %v50 = vshrl.u32 %v49, 7
  %v51 = vsub.s32 0, %v50
  %v52 = vrot.slane %v23, %v51
  %v54 = vadd.f32 %v39, %v52
  %v55 = vadd.f32 %v40, %v52
  %v56 = vadd.f32 %v41, %v52
  %v57 = vadd.f32 %v42, %v52
  %v58 = vadd.f32 %v43, %v52
  %v59 = vadd.f32 %v44, %v52
  %v60 = vadd.f32 %v45, %v52
  %v61 = vadd.f32 %v46, %v52
  %v62 = vadd.f32 %v47, %v52
  %v63 = vmax.f32 %v54, 0.0
  %v64 = vmax.f32 %v55, 0.0
  %v65 = vmax.f32 %v56, 0.0
  %v66 = vmax.f32 %v57, 0.0
  %v67 = vmax.f32 %v58, 0.0
  %v68 = vmax.f32 %v59, 0.0
  %v69 = vmax.f32 %v60, 0.0
  %v70 = vmax.f32 %v61, 0.0
  %v71 = vmax.f32 %v62, 0.0
  %v72 = vld [vmem:[%s2] sm:$0xff]
  %v73 = vld [vmem:[%s2 + $0x8] sm:$0xff]
  %v74 = vld [vmem:[%s2 + $0x10] sm:$0xff]
  %v75 = vld [vmem:[%s2 + $0x18] sm:$0xff]
  %v76 = vld [vmem:[%s2 + $0x20] sm:$0xff]
  %v77 = vld [vmem:[%s2 + $0x28] sm:$0xff]
  %v78 = vld [vmem:[%s2 + $0x30] sm:$0xff]
  %v79 = vld [vmem:[%s2 + $0x38] sm:$0xff]
  %v80 = vld [vmem:[%s2 + $0x40] sm:$0xff]
  %82 = vset.pattern.permute.xlu0 0
  %83 = vperm.xlu0 %82, %v72
  %v84 = vpop.permute.xlu0 %83
  %87 = vset.pattern.permute.xlu0 0
  %88 = vperm.xlu0 %87, %v73
  %v89 = vpop.permute.xlu0 %88
  %92 = vset.pattern.permute.xlu0 0
  %93 = vperm.xlu0 %92, %v74
  %v94 = vpop.permute.xlu0 %93
  %97 = vset.pattern.permute.xlu0 0
  %98 = vperm.xlu0 %97, %v75
  %v99 = vpop.permute.xlu0 %98
  %102 = vset.pattern.permute.xlu0 0
  %103 = vperm.xlu0 %102, %v76
  %v104 = vpop.permute.xlu0 %103
  %107 = vset.pattern.permute.xlu0 0
  %108 = vperm.xlu0 %107, %v77
  %v109 = vpop.permute.xlu0 %108
  %112 = vset.pattern.permute.xlu0 0
  %113 = vperm.xlu0 %112, %v78
  %v114 = vpop.permute.xlu0 %113
  %117 = vset.pattern.permute.xlu0 0
  %118 = vperm.xlu0 %117, %v79
  %v119 = vpop.permute.xlu0 %118
  %122 = vset.pattern.permute.xlu0 0
  %123 = vperm.xlu0 %122, %v80
  %v124 = vpop.permute.xlu0 %123
  %v126 = vmul.f32 %v63, %v84
  %v127 = vmul.f32 %v64, %v89
  %v128 = vmul.f32 %v65, %v94
  %v129 = vmul.f32 %v66, %v99
  %v130 = vmul.f32 %v67, %v104
  %v131 = vmul.f32 %v68, %v109
  %v132 = vmul.f32 %v69, %v114
  %v133 = vmul.f32 %v70, %v119
  %v134 = vmul.f32 %v71, %v124
  %v135 = vld [vmem:[%s1] sm:$0xff]
  %v136 = vld [vmem:[%s1 + $0x8] sm:$0xff]
  %v137 = vld [vmem:[%s1 + $0x10] sm:$0xff]
  %v138 = vld [vmem:[%s1 + $0x18] sm:$0xff]
  %v139 = vld [vmem:[%s1 + $0x20] sm:$0xff]
  %v140 = vld [vmem:[%s1 + $0x28] sm:$0xff]
  %v141 = vld [vmem:[%s1 + $0x30] sm:$0xff]
  %v142 = vld [vmem:[%s1 + $0x38] sm:$0xff]
  %v143 = vld [vmem:[%s1 + $0x40] sm:$0xff]
  %v144 = vmax.f32 %v135, 0.0
  %v145 = vmax.f32 %v136, 0.0
  %v146 = vmax.f32 %v137, 0.0
  %v147 = vmax.f32 %v138, 0.0
  %v148 = vmax.f32 %v139, 0.0
  %v149 = vmax.f32 %v140, 0.0
  %v150 = vmax.f32 %v141, 0.0
  %v151 = vmax.f32 %v142, 0.0
  %v152 = vmax.f32 %v143, 0.0
  %s153 = scalar_lea.vmem %s0, 72
  %v154 = vld [vmem:[%s153] sm:$0xff]
  %v155 = vld [vmem:[%s153 + $0x8] sm:$0xff]
  %v156 = vld [vmem:[%s153 + $0x10] sm:$0xff]
  %v157 = vld [vmem:[%s153 + $0x18] sm:$0xff]
  %v158 = vld [vmem:[%s153 + $0x20] sm:$0xff]
  %v159 = vld [vmem:[%s153 + $0x28] sm:$0xff]
  %v160 = vld [vmem:[%s153 + $0x30] sm:$0xff]
  %v161 = vld [vmem:[%s153 + $0x38] sm:$0xff]
  %v162 = vld [vmem:[%s153 + $0x40] sm:$0xff]
  %v163 = vmul.f32 %v154, %v37
  %v164 = vmul.f32 %v155, %v37
  %v165 = vmul.f32 %v156, %v37
  %v166 = vmul.f32 %v157, %v37
  %v167 = vmul.f32 %v158, %v37
  %v168 = vmul.f32 %v159, %v37
  %v169 = vmul.f32 %v160, %v37
  %v170 = vmul.f32 %v161, %v37
  %v171 = vmul.f32 %v162, %v37
  %v172 = vadd.f32 %v163, %v52
  %v173 = vadd.f32 %v164, %v52
  %v174 = vadd.f32 %v165, %v52
  %v175 = vadd.f32 %v166, %v52
  %v176 = vadd.f32 %v167, %v52
  %v177 = vadd.f32 %v168, %v52
  %v178 = vadd.f32 %v169, %v52
  %v179 = vadd.f32 %v170, %v52
  %v180 = vadd.f32 %v171, %v52
  %v181 = vmax.f32 %v172, 0.0
  %v182 = vmax.f32 %v173, 0.0
  %v183 = vmax.f32 %v174, 0.0
  %v184 = vmax.f32 %v175, 0.0
  %v185 = vmax.f32 %v176, 0.0
  %v186 = vmax.f32 %v177, 0.0
  %v187 = vmax.f32 %v178, 0.0
  %v188 = vmax.f32 %v179, 0.0
  %v189 = vmax.f32 %v180, 0.0
  %s190 = scalar_lea.vmem %s2, 72
  %v191 = vld [vmem:[%s190] sm:$0xff]
  %v192 = vld [vmem:[%s190 + $0x8] sm:$0xff]
  %v193 = vld [vmem:[%s190 + $0x10] sm:$0xff]
  %v194 = vld [vmem:[%s190 + $0x18] sm:$0xff]
  %v195 = vld [vmem:[%s190 + $0x20] sm:$0xff]
  %v196 = vld [vmem:[%s190 + $0x28] sm:$0xff]
  %v197 = vld [vmem:[%s190 + $0x30] sm:$0xff]
  %v198 = vld [vmem:[%s190 + $0x38] sm:$0xff]
  %v199 = vld [vmem:[%s190 + $0x40] sm:$0xff]
  %201 = vset.pattern.permute.xlu0 0
  %202 = vperm.xlu0 %201, %v191
  %v203 = vpop.permute.xlu0 %202
  %206 = vset.pattern.permute.xlu0 0
  %207 = vperm.xlu0 %206, %v192
  %v208 = vpop.permute.xlu0 %207
  %211 = vset.pattern.permute.xlu0 0
  %212 = vperm.xlu0 %211, %v193
  %v213 = vpop.permute.xlu0 %212
  %216 = vset.pattern.permute.xlu0 0
  %217 = vperm.xlu0 %216, %v194
  %v218 = vpop.permute.xlu0 %217
  %221 = vset.pattern.permute.xlu0 0
  %222 = vperm.xlu0 %221, %v195
  %v223 = vpop.permute.xlu0 %222
  %226 = vset.pattern.permute.xlu0 0
  %227 = vperm.xlu0 %226, %v196
  %v228 = vpop.permute.xlu0 %227
  %231 = vset.pattern.permute.xlu0 0
  %232 = vperm.xlu0 %231, %v197
  %v233 = vpop.permute.xlu0 %232
  %236 = vset.pattern.permute.xlu0 0
  %237 = vperm.xlu0 %236, %v198
  %v238 = vpop.permute.xlu0 %237
  %241 = vset.pattern.permute.xlu0 0
  %242 = vperm.xlu0 %241, %v199
  %v243 = vpop.permute.xlu0 %242
  %v245 = vmul.f32 %v181, %v203
  %v246 = vmul.f32 %v182, %v208
  %v247 = vmul.f32 %v183, %v213
  %v248 = vmul.f32 %v184, %v218
  %v249 = vmul.f32 %v185, %v223
  %v250 = vmul.f32 %v186, %v228
  %v251 = vmul.f32 %v187, %v233
  %v252 = vmul.f32 %v188, %v238
  %v253 = vmul.f32 %v189, %v243
  %v254 = vmax.f32 %v126, %v245
  %v255 = vmax.f32 %v127, %v246
  %v256 = vmax.f32 %v128, %v247
  %v257 = vmax.f32 %v129, %v248
  %v258 = vmax.f32 %v130, %v249
  %v259 = vmax.f32 %v131, %v250
  %v260 = vmax.f32 %v132, %v251
  %v261 = vmax.f32 %v133, %v252
  %v262 = vmax.f32 %v134, %v253
  %s263 = scalar_lea.vmem %s1, 72
  %v264 = vld [vmem:[%s263] sm:$0xff]
  %v265 = vld [vmem:[%s263 + $0x8] sm:$0xff]
  %v266 = vld [vmem:[%s263 + $0x10] sm:$0xff]
  %v267 = vld [vmem:[%s263 + $0x18] sm:$0xff]
  %v268 = vld [vmem:[%s263 + $0x20] sm:$0xff]
  %v269 = vld [vmem:[%s263 + $0x28] sm:$0xff]
  %v270 = vld [vmem:[%s263 + $0x30] sm:$0xff]
  %v271 = vld [vmem:[%s263 + $0x38] sm:$0xff]
  %v272 = vld [vmem:[%s263 + $0x40] sm:$0xff]
  %v273 = vmax.f32 %v264, 0.0
  %v274 = vmax.f32 %v265, 0.0
  %v275 = vmax.f32 %v266, 0.0
  %v276 = vmax.f32 %v267, 0.0
  %v277 = vmax.f32 %v268, 0.0
  %v278 = vmax.f32 %v269, 0.0
  %v279 = vmax.f32 %v270, 0.0
  %v280 = vmax.f32 %v271, 0.0
  %v281 = vmax.f32 %v272, 0.0
  %v282 = vmax.f32 %v144, %v273
  %v283 = vmax.f32 %v145, %v274
  %v284 = vmax.f32 %v146, %v275
  %v285 = vmax.f32 %v147, %v276
  %v286 = vmax.f32 %v148, %v277
  %v287 = vmax.f32 %v149, %v278
  %v288 = vmax.f32 %v150, %v279
  %v289 = vmax.f32 %v151, %v280
  %v290 = vmax.f32 %v152, %v281
  %s291 = scalar_lea.vmem %s0, 144
  %v292 = vld [vmem:[%s291] sm:$0xff]
  %v293 = vld [vmem:[%s291 + $0x8] sm:$0xff]
  %v294 = vld [vmem:[%s291 + $0x10] sm:$0xff]
  %v295 = vld [vmem:[%s291 + $0x18] sm:$0xff]
  %v296 = vld [vmem:[%s291 + $0x20] sm:$0xff]
  %v297 = vld [vmem:[%s291 + $0x28] sm:$0xff]
  %v298 = vld [vmem:[%s291 + $0x30] sm:$0xff]
  %v299 = vld [vmem:[%s291 + $0x38] sm:$0xff]
  %v300 = vld [vmem:[%s291 + $0x40] sm:$0xff]
  %v301 = vmul.f32 %v292, %v37
  %v302 = vmul.f32 %v293, %v37
  %v303 = vmul.f32 %v294, %v37
  %v304 = vmul.f32 %v295, %v37
  %v305 = vmul.f32 %v296, %v37
  %v306 = vmul.f32 %v297, %v37
  %v307 = vmul.f32 %v298, %v37
  %v308 = vmul.f32 %v299, %v37
  %v309 = vmul.f32 %v300, %v37
  %v310 = vadd.f32 %v301, %v52
  %v311 = vadd.f32 %v302, %v52
  %v312 = vadd.f32 %v303, %v52
  %v313 = vadd.f32 %v304, %v52
  %v314 = vadd.f32 %v305, %v52
  %v315 = vadd.f32 %v306, %v52
  %v316 = vadd.f32 %v307, %v52
  %v317 = vadd.f32 %v308, %v52
  %v318 = vadd.f32 %v309, %v52
  %v319 = vmax.f32 %v310, 0.0
  %v320 = vmax.f32 %v311, 0.0
  %v321 = vmax.f32 %v312, 0.0
  %v322 = vmax.f32 %v313, 0.0
  %v323 = vmax.f32 %v314, 0.0
  %v324 = vmax.f32 %v315, 0.0
  %v325 = vmax.f32 %v316, 0.0
  %v326 = vmax.f32 %v317, 0.0
  %v327 = vmax.f32 %v318, 0.0
  %s328 = scalar_lea.vmem %s2, 144
  %v329 = vld [vmem:[%s328] sm:$0xff]
  %v330 = vld [vmem:[%s328 + $0x8] sm:$0xff]
  %v331 = vld [vmem:[%s328 + $0x10] sm:$0xff]
  %v332 = vld [vmem:[%s328 + $0x18] sm:$0xff]
  %v333 = vld [vmem:[%s328 + $0x20] sm:$0xff]
  %v334 = vld [vmem:[%s328 + $0x28] sm:$0xff]
  %v335 = vld [vmem:[%s328 + $0x30] sm:$0xff]
  %v336 = vld [vmem:[%s328 + $0x38] sm:$0xff]
  %v337 = vld [vmem:[%s328 + $0x40] sm:$0xff]
  %339 = vset.pattern.permute.xlu0 0
  %340 = vperm.xlu0 %339, %v329
  %v341 = vpop.permute.xlu0 %340
  %344 = vset.pattern.permute.xlu0 0
  %345 = vperm.xlu0 %344, %v330
  %v346 = vpop.permute.xlu0 %345
  %349 = vset.pattern.permute.xlu0 0
  %350 = vperm.xlu0 %349, %v331
  %v351 = vpop.permute.xlu0 %350
  %354 = vset.pattern.permute.xlu0 0
  %355 = vperm.xlu0 %354, %v332
  %v356 = vpop.permute.xlu0 %355
  %359 = vset.pattern.permute.xlu0 0
  %360 = vperm.xlu0 %359, %v333
  %v361 = vpop.permute.xlu0 %360
  %364 = vset.pattern.permute.xlu0 0
  %365 = vperm.xlu0 %364, %v334
  %v366 = vpop.permute.xlu0 %365
  %369 = vset.pattern.permute.xlu0 0
  %370 = vperm.xlu0 %369, %v335
  %v371 = vpop.permute.xlu0 %370
  %374 = vset.pattern.permute.xlu0 0
  %375 = vperm.xlu0 %374, %v336
  %v376 = vpop.permute.xlu0 %375
  %379 = vset.pattern.permute.xlu0 0
  %380 = vperm.xlu0 %379, %v337
  %v381 = vpop.permute.xlu0 %380
  %v383 = vmul.f32 %v319, %v341
  %v384 = vmul.f32 %v320, %v346
  %v385 = vmul.f32 %v321, %v351
  %v386 = vmul.f32 %v322, %v356
  %v387 = vmul.f32 %v323, %v361
  %v388 = vmul.f32 %v324, %v366
  %v389 = vmul.f32 %v325, %v371
  %v390 = vmul.f32 %v326, %v376
  %v391 = vmul.f32 %v327, %v381
  %v392 = vmax.f32 %v254, %v383
  %v393 = vmax.f32 %v255, %v384
  %v394 = vmax.f32 %v256, %v385
  %v395 = vmax.f32 %v257, %v386
  %v396 = vmax.f32 %v258, %v387
  %v397 = vmax.f32 %v259, %v388
  %v398 = vmax.f32 %v260, %v389
  %v399 = vmax.f32 %v261, %v390
  %v400 = vmax.f32 %v262, %v391
  %s401 = scalar_lea.vmem %s1, 144
  %v402 = vld [vmem:[%s401] sm:$0xff]
  %v403 = vld [vmem:[%s401 + $0x8] sm:$0xff]
  %v404 = vld [vmem:[%s401 + $0x10] sm:$0xff]
  %v405 = vld [vmem:[%s401 + $0x18] sm:$0xff]
  %v406 = vld [vmem:[%s401 + $0x20] sm:$0xff]
  %v407 = vld [vmem:[%s401 + $0x28] sm:$0xff]
  %v408 = vld [vmem:[%s401 + $0x30] sm:$0xff]
  %v409 = vld [vmem:[%s401 + $0x38] sm:$0xff]
  %v410 = vld [vmem:[%s401 + $0x40] sm:$0xff]
  %v411 = vmax.f32 %v402, 0.0
  %v412 = vmax.f32 %v403, 0.0
  %v413 = vmax.f32 %v404, 0.0
  %v414 = vmax.f32 %v405, 0.0
  %v415 = vmax.f32 %v406, 0.0
  %v416 = vmax.f32 %v407, 0.0
  %v417 = vmax.f32 %v408, 0.0
  %v418 = vmax.f32 %v409, 0.0
  %v419 = vmax.f32 %v410, 0.0
  %v420 = vmax.f32 %v282, %v411
  %v421 = vmax.f32 %v283, %v412
  %v422 = vmax.f32 %v284, %v413
  %v423 = vmax.f32 %v285, %v414
  %v424 = vmax.f32 %v286, %v415
  %v425 = vmax.f32 %v287, %v416
  %v426 = vmax.f32 %v288, %v417
  %v427 = vmax.f32 %v289, %v418
  %v428 = vmax.f32 %v290, %v419
  %s429 = scalar_lea.vmem %s0, 216
  %v430 = vld [vmem:[%s429] sm:$0xff]
  %v431 = vld [vmem:[%s429 + $0x8] sm:$0xff]
  %v432 = vld [vmem:[%s429 + $0x10] sm:$0xff]
  %v433 = vld [vmem:[%s429 + $0x18] sm:$0xff]
  %v434 = vld [vmem:[%s429 + $0x20] sm:$0xff]
  %v435 = vld [vmem:[%s429 + $0x28] sm:$0xff]
  %v436 = vld [vmem:[%s429 + $0x30] sm:$0xff]
  %v437 = vld [vmem:[%s429 + $0x38] sm:$0xff]
  %v438 = vld [vmem:[%s429 + $0x40] sm:$0xff]
  %v439 = vmul.f32 %v430, %v37
  %v440 = vmul.f32 %v431, %v37
  %v441 = vmul.f32 %v432, %v37
  %v442 = vmul.f32 %v433, %v37
  %v443 = vmul.f32 %v434, %v37
  %v444 = vmul.f32 %v435, %v37
  %v445 = vmul.f32 %v436, %v37
  %v446 = vmul.f32 %v437, %v37
  %v447 = vmul.f32 %v438, %v37
  %v448 = vadd.f32 %v439, %v52
  %v449 = vadd.f32 %v440, %v52
  %v450 = vadd.f32 %v441, %v52
  %v451 = vadd.f32 %v442, %v52
  %v452 = vadd.f32 %v443, %v52
  %v453 = vadd.f32 %v444, %v52
  %v454 = vadd.f32 %v445, %v52
  %v455 = vadd.f32 %v446, %v52
  %v456 = vadd.f32 %v447, %v52
  %v457 = vmax.f32 %v448, 0.0
  %v458 = vmax.f32 %v449, 0.0
  %v459 = vmax.f32 %v450, 0.0
  %v460 = vmax.f32 %v451, 0.0
  %v461 = vmax.f32 %v452, 0.0
  %v462 = vmax.f32 %v453, 0.0
  %v463 = vmax.f32 %v454, 0.0
  %v464 = vmax.f32 %v455, 0.0
  %v465 = vmax.f32 %v456, 0.0
  %s466 = scalar_lea.vmem %s2, 216
  %v467 = vld [vmem:[%s466] sm:$0xff]
  %v468 = vld [vmem:[%s466 + $0x8] sm:$0xff]
  %v469 = vld [vmem:[%s466 + $0x10] sm:$0xff]
  %v470 = vld [vmem:[%s466 + $0x18] sm:$0xff]
  %v471 = vld [vmem:[%s466 + $0x20] sm:$0xff]
  %v472 = vld [vmem:[%s466 + $0x28] sm:$0xff]
  %v473 = vld [vmem:[%s466 + $0x30] sm:$0xff]
  %v474 = vld [vmem:[%s466 + $0x38] sm:$0xff]
  %v475 = vld [vmem:[%s466 + $0x40] sm:$0xff]
  %477 = vset.pattern.permute.xlu0 0
  %478 = vperm.xlu0 %477, %v467
  %v479 = vpop.permute.xlu0 %478
  %482 = vset.pattern.permute.xlu0 0
  %483 = vperm.xlu0 %482, %v468
  %v484 = vpop.permute.xlu0 %483
  %487 = vset.pattern.permute.xlu0 0
  %488 = vperm.xlu0 %487, %v469
  %v489 = vpop.permute.xlu0 %488
  %492 = vset.pattern.permute.xlu0 0
  %493 = vperm.xlu0 %492, %v470
  %v494 = vpop.permute.xlu0 %493
  %497 = vset.pattern.permute.xlu0 0
  %498 = vperm.xlu0 %497, %v471
  %v499 = vpop.permute.xlu0 %498
  %502 = vset.pattern.permute.xlu0 0
  %503 = vperm.xlu0 %502, %v472
  %v504 = vpop.permute.xlu0 %503
  %507 = vset.pattern.permute.xlu0 0
  %508 = vperm.xlu0 %507, %v473
  %v509 = vpop.permute.xlu0 %508
  %512 = vset.pattern.permute.xlu0 0
  %513 = vperm.xlu0 %512, %v474
  %v514 = vpop.permute.xlu0 %513
  %517 = vset.pattern.permute.xlu0 0
  %518 = vperm.xlu0 %517, %v475
  %v519 = vpop.permute.xlu0 %518
  %v521 = vmul.f32 %v457, %v479
  %v522 = vmul.f32 %v458, %v484
  %v523 = vmul.f32 %v459, %v489
  %v524 = vmul.f32 %v460, %v494
  %v525 = vmul.f32 %v461, %v499
  %v526 = vmul.f32 %v462, %v504
  %v527 = vmul.f32 %v463, %v509
  %v528 = vmul.f32 %v464, %v514
  %v529 = vmul.f32 %v465, %v519
  %v530 = vmax.f32 %v392, %v521
  %v531 = vmax.f32 %v393, %v522
  %v532 = vmax.f32 %v394, %v523
  %v533 = vmax.f32 %v395, %v524
  %v534 = vmax.f32 %v396, %v525
  %v535 = vmax.f32 %v397, %v526
  %v536 = vmax.f32 %v398, %v527
  %v537 = vmax.f32 %v399, %v528
  %v538 = vmax.f32 %v400, %v529
  %s539 = scalar_lea.vmem %s1, 216
  %v540 = vld [vmem:[%s539] sm:$0xff]
  %v541 = vld [vmem:[%s539 + $0x8] sm:$0xff]
  %v542 = vld [vmem:[%s539 + $0x10] sm:$0xff]
  %v543 = vld [vmem:[%s539 + $0x18] sm:$0xff]
  %v544 = vld [vmem:[%s539 + $0x20] sm:$0xff]
  %v545 = vld [vmem:[%s539 + $0x28] sm:$0xff]
  %v546 = vld [vmem:[%s539 + $0x30] sm:$0xff]
  %v547 = vld [vmem:[%s539 + $0x38] sm:$0xff]
  %v548 = vld [vmem:[%s539 + $0x40] sm:$0xff]
  %v549 = vmax.f32 %v540, 0.0
  %v550 = vmax.f32 %v541, 0.0
  %v551 = vmax.f32 %v542, 0.0
  %v552 = vmax.f32 %v543, 0.0
  %v553 = vmax.f32 %v544, 0.0
  %v554 = vmax.f32 %v545, 0.0
  %v555 = vmax.f32 %v546, 0.0
  %v556 = vmax.f32 %v547, 0.0
  %v557 = vmax.f32 %v548, 0.0
  %v558 = vmax.f32 %v420, %v549
  %v559 = vmax.f32 %v421, %v550
  %v560 = vmax.f32 %v422, %v551
  %v561 = vmax.f32 %v423, %v552
  %v562 = vmax.f32 %v424, %v553
  %v563 = vmax.f32 %v425, %v554
  %v564 = vmax.f32 %v426, %v555
  %v565 = vmax.f32 %v427, %v556
  %v566 = vmax.f32 %v428, %v557
  %s567 = scalar_lea.vmem %s0, 288
  %v568 = vld [vmem:[%s567] sm:$0xff]
  %v569 = vld [vmem:[%s567 + $0x8] sm:$0xff]
  %v570 = vld [vmem:[%s567 + $0x10] sm:$0xff]
  %v571 = vld [vmem:[%s567 + $0x18] sm:$0xff]
  %v572 = vld [vmem:[%s567 + $0x20] sm:$0xff]
  %v573 = vld [vmem:[%s567 + $0x28] sm:$0xff]
  %v574 = vld [vmem:[%s567 + $0x30] sm:$0xff]
  %v575 = vld [vmem:[%s567 + $0x38] sm:$0xff]
  %v576 = vld [vmem:[%s567 + $0x40] sm:$0xff]
  %v577 = vmul.f32 %v568, %v37
  %v578 = vmul.f32 %v569, %v37
  %v579 = vmul.f32 %v570, %v37
  %v580 = vmul.f32 %v571, %v37
  %v581 = vmul.f32 %v572, %v37
  %v582 = vmul.f32 %v573, %v37
  %v583 = vmul.f32 %v574, %v37
  %v584 = vmul.f32 %v575, %v37
  %v585 = vmul.f32 %v576, %v37
  %v586 = vadd.f32 %v577, %v52
  %v587 = vadd.f32 %v578, %v52
  %v588 = vadd.f32 %v579, %v52
  %v589 = vadd.f32 %v580, %v52
  %v590 = vadd.f32 %v581, %v52
  %v591 = vadd.f32 %v582, %v52
  %v592 = vadd.f32 %v583, %v52
  %v593 = vadd.f32 %v584, %v52
  %v594 = vadd.f32 %v585, %v52
  %v595 = vmax.f32 %v586, 0.0
  %v596 = vmax.f32 %v587, 0.0
  %v597 = vmax.f32 %v588, 0.0
  %v598 = vmax.f32 %v589, 0.0
  %v599 = vmax.f32 %v590, 0.0
  %v600 = vmax.f32 %v591, 0.0
  %v601 = vmax.f32 %v592, 0.0
  %v602 = vmax.f32 %v593, 0.0
  %v603 = vmax.f32 %v594, 0.0
  %s604 = scalar_lea.vmem %s2, 288
  %v605 = vld [vmem:[%s604] sm:$0xff]
  %v606 = vld [vmem:[%s604 + $0x8] sm:$0xff]
  %v607 = vld [vmem:[%s604 + $0x10] sm:$0xff]
  %v608 = vld [vmem:[%s604 + $0x18] sm:$0xff]
  %v609 = vld [vmem:[%s604 + $0x20] sm:$0xff]
  %v610 = vld [vmem:[%s604 + $0x28] sm:$0xff]
  %v611 = vld [vmem:[%s604 + $0x30] sm:$0xff]
  %v612 = vld [vmem:[%s604 + $0x38] sm:$0xff]
  %v613 = vld [vmem:[%s604 + $0x40] sm:$0xff]
  %615 = vset.pattern.permute.xlu0 0
  %616 = vperm.xlu0 %615, %v605
  %v617 = vpop.permute.xlu0 %616
  %620 = vset.pattern.permute.xlu0 0
  %621 = vperm.xlu0 %620, %v606
  %v622 = vpop.permute.xlu0 %621
  %625 = vset.pattern.permute.xlu0 0
  %626 = vperm.xlu0 %625, %v607
  %v627 = vpop.permute.xlu0 %626
  %630 = vset.pattern.permute.xlu0 0
  %631 = vperm.xlu0 %630, %v608
  %v632 = vpop.permute.xlu0 %631
  %635 = vset.pattern.permute.xlu0 0
  %636 = vperm.xlu0 %635, %v609
  %v637 = vpop.permute.xlu0 %636
  %640 = vset.pattern.permute.xlu0 0
  %641 = vperm.xlu0 %640, %v610
  %v642 = vpop.permute.xlu0 %641
  %645 = vset.pattern.permute.xlu0 0
  %646 = vperm.xlu0 %645, %v611
  %v647 = vpop.permute.xlu0 %646
  %650 = vset.pattern.permute.xlu0 0
  %651 = vperm.xlu0 %650, %v612
  %v652 = vpop.permute.xlu0 %651
  %655 = vset.pattern.permute.xlu0 0
  %656 = vperm.xlu0 %655, %v613
  %v657 = vpop.permute.xlu0 %656
  %v659 = vmul.f32 %v595, %v617
  %v660 = vmul.f32 %v596, %v622
  %v661 = vmul.f32 %v597, %v627
  %v662 = vmul.f32 %v598, %v632
  %v663 = vmul.f32 %v599, %v637
  %v664 = vmul.f32 %v600, %v642
  %v665 = vmul.f32 %v601, %v647
  %v666 = vmul.f32 %v602, %v652
  %v667 = vmul.f32 %v603, %v657
  %v668 = vmax.f32 %v530, %v659
  %v669 = vmax.f32 %v531, %v660
  %v670 = vmax.f32 %v532, %v661
  %v671 = vmax.f32 %v533, %v662
  %v672 = vmax.f32 %v534, %v663
  %v673 = vmax.f32 %v535, %v664
  %v674 = vmax.f32 %v536, %v665
  %v675 = vmax.f32 %v537, %v666
  %v676 = vmax.f32 %v538, %v667
  %s677 = scalar_lea.vmem %s1, 288
  %v678 = vld [vmem:[%s677] sm:$0xff]
  %v679 = vld [vmem:[%s677 + $0x8] sm:$0xff]
  %v680 = vld [vmem:[%s677 + $0x10] sm:$0xff]
  %v681 = vld [vmem:[%s677 + $0x18] sm:$0xff]
  %v682 = vld [vmem:[%s677 + $0x20] sm:$0xff]
  %v683 = vld [vmem:[%s677 + $0x28] sm:$0xff]
  %v684 = vld [vmem:[%s677 + $0x30] sm:$0xff]
  %v685 = vld [vmem:[%s677 + $0x38] sm:$0xff]
  %v686 = vld [vmem:[%s677 + $0x40] sm:$0xff]
  %v687 = vmax.f32 %v678, 0.0
  %v688 = vmax.f32 %v679, 0.0
  %v689 = vmax.f32 %v680, 0.0
  %v690 = vmax.f32 %v681, 0.0
  %v691 = vmax.f32 %v682, 0.0
  %v692 = vmax.f32 %v683, 0.0
  %v693 = vmax.f32 %v684, 0.0
  %v694 = vmax.f32 %v685, 0.0
  %v695 = vmax.f32 %v686, 0.0
  %v696 = vmax.f32 %v558, %v687
  %v697 = vmax.f32 %v559, %v688
  %v698 = vmax.f32 %v560, %v689
  %v699 = vmax.f32 %v561, %v690
  %v700 = vmax.f32 %v562, %v691
  %v701 = vmax.f32 %v563, %v692
  %v702 = vmax.f32 %v564, %v693
  %v703 = vmax.f32 %v565, %v694
  %v704 = vmax.f32 %v566, %v695
  %s705 = scalar_lea.vmem %s0, 360
  %v706 = vld [vmem:[%s705] sm:$0xff]
  %v707 = vld [vmem:[%s705 + $0x8] sm:$0xff]
  %v708 = vld [vmem:[%s705 + $0x10] sm:$0xff]
  %v709 = vld [vmem:[%s705 + $0x18] sm:$0xff]
  %v710 = vld [vmem:[%s705 + $0x20] sm:$0xff]
  %v711 = vld [vmem:[%s705 + $0x28] sm:$0xff]
  %v712 = vld [vmem:[%s705 + $0x30] sm:$0xff]
  %v713 = vld [vmem:[%s705 + $0x38] sm:$0xff]
  %v714 = vld [vmem:[%s705 + $0x40] sm:$0xff]
  %v715 = vmul.f32 %v706, %v37
  %v716 = vmul.f32 %v707, %v37
  %v717 = vmul.f32 %v708, %v37
  %v718 = vmul.f32 %v709, %v37
  %v719 = vmul.f32 %v710, %v37
  %v720 = vmul.f32 %v711, %v37
  %v721 = vmul.f32 %v712, %v37
  %v722 = vmul.f32 %v713, %v37
  %v723 = vmul.f32 %v714, %v37
  %v724 = vadd.f32 %v715, %v52
  %v725 = vadd.f32 %v716, %v52
  %v726 = vadd.f32 %v717, %v52
  %v727 = vadd.f32 %v718, %v52
  %v728 = vadd.f32 %v719, %v52
  %v729 = vadd.f32 %v720, %v52
  %v730 = vadd.f32 %v721, %v52
  %v731 = vadd.f32 %v722, %v52
  %v732 = vadd.f32 %v723, %v52
  %v733 = vmax.f32 %v724, 0.0
  %v734 = vmax.f32 %v725, 0.0
  %v735 = vmax.f32 %v726, 0.0
  %v736 = vmax.f32 %v727, 0.0
  %v737 = vmax.f32 %v728, 0.0
  %v738 = vmax.f32 %v729, 0.0
  %v739 = vmax.f32 %v730, 0.0
  %v740 = vmax.f32 %v731, 0.0
  %v741 = vmax.f32 %v732, 0.0
  %s742 = scalar_lea.vmem %s2, 360
  %v743 = vld [vmem:[%s742] sm:$0xff]
  %v744 = vld [vmem:[%s742 + $0x8] sm:$0xff]
  %v745 = vld [vmem:[%s742 + $0x10] sm:$0xff]
  %v746 = vld [vmem:[%s742 + $0x18] sm:$0xff]
  %v747 = vld [vmem:[%s742 + $0x20] sm:$0xff]
  %v748 = vld [vmem:[%s742 + $0x28] sm:$0xff]
  %v749 = vld [vmem:[%s742 + $0x30] sm:$0xff]
  %v750 = vld [vmem:[%s742 + $0x38] sm:$0xff]
  %v751 = vld [vmem:[%s742 + $0x40] sm:$0xff]
  %753 = vset.pattern.permute.xlu0 0
  %754 = vperm.xlu0 %753, %v743
  %v755 = vpop.permute.xlu0 %754
  %758 = vset.pattern.permute.xlu0 0
  %759 = vperm.xlu0 %758, %v744
  %v760 = vpop.permute.xlu0 %759
  %763 = vset.pattern.permute.xlu0 0
  %764 = vperm.xlu0 %763, %v745
  %v765 = vpop.permute.xlu0 %764
  %768 = vset.pattern.permute.xlu0 0
  %769 = vperm.xlu0 %768, %v746
  %v770 = vpop.permute.xlu0 %769
  %773 = vset.pattern.permute.xlu0 0
  %774 = vperm.xlu0 %773, %v747
  %v775 = vpop.permute.xlu0 %774
  %778 = vset.pattern.permute.xlu0 0
  %779 = vperm.xlu0 %778, %v748
  %v780 = vpop.permute.xlu0 %779
  %783 = vset.pattern.permute.xlu0 0
  %784 = vperm.xlu0 %783, %v749
  %v785 = vpop.permute.xlu0 %784
  %788 = vset.pattern.permute.xlu0 0
  %789 = vperm.xlu0 %788, %v750
  %v790 = vpop.permute.xlu0 %789
  %793 = vset.pattern.permute.xlu0 0
  %794 = vperm.xlu0 %793, %v751
  %v795 = vpop.permute.xlu0 %794
  %v797 = vmul.f32 %v733, %v755
  %v798 = vmul.f32 %v734, %v760
  %v799 = vmul.f32 %v735, %v765
  %v800 = vmul.f32 %v736, %v770
  %v801 = vmul.f32 %v737, %v775
  %v802 = vmul.f32 %v738, %v780
  %v803 = vmul.f32 %v739, %v785
  %v804 = vmul.f32 %v740, %v790
  %v805 = vmul.f32 %v741, %v795
  %v806 = vmax.f32 %v668, %v797
  %v807 = vmax.f32 %v669, %v798
  %v808 = vmax.f32 %v670, %v799
  %v809 = vmax.f32 %v671, %v800
  %v810 = vmax.f32 %v672, %v801
  %v811 = vmax.f32 %v673, %v802
  %v812 = vmax.f32 %v674, %v803
  %v813 = vmax.f32 %v675, %v804
  %v814 = vmax.f32 %v676, %v805
  %s815 = scalar_lea.vmem %s1, 360
  %v816 = vld [vmem:[%s815] sm:$0xff]
  %v817 = vld [vmem:[%s815 + $0x8] sm:$0xff]
  %v818 = vld [vmem:[%s815 + $0x10] sm:$0xff]
  %v819 = vld [vmem:[%s815 + $0x18] sm:$0xff]
  %v820 = vld [vmem:[%s815 + $0x20] sm:$0xff]
  %v821 = vld [vmem:[%s815 + $0x28] sm:$0xff]
  %v822 = vld [vmem:[%s815 + $0x30] sm:$0xff]
  %v823 = vld [vmem:[%s815 + $0x38] sm:$0xff]
  %v824 = vld [vmem:[%s815 + $0x40] sm:$0xff]
  %v825 = vmax.f32 %v816, 0.0
  %v826 = vmax.f32 %v817, 0.0
  %v827 = vmax.f32 %v818, 0.0
  %v828 = vmax.f32 %v819, 0.0
  %v829 = vmax.f32 %v820, 0.0
  %v830 = vmax.f32 %v821, 0.0
  %v831 = vmax.f32 %v822, 0.0
  %v832 = vmax.f32 %v823, 0.0
  %v833 = vmax.f32 %v824, 0.0
  %v834 = vmax.f32 %v696, %v825
  %v835 = vmax.f32 %v697, %v826
  %v836 = vmax.f32 %v698, %v827
  %v837 = vmax.f32 %v699, %v828
  %v838 = vmax.f32 %v700, %v829
  %v839 = vmax.f32 %v701, %v830
  %v840 = vmax.f32 %v702, %v831
  %v841 = vmax.f32 %v703, %v832
  %v842 = vmax.f32 %v704, %v833
  %s843 = scalar_lea.vmem %s0, 432
  %v844 = vld [vmem:[%s843] sm:$0xff]
  %v845 = vld [vmem:[%s843 + $0x8] sm:$0xff]
  %v846 = vld [vmem:[%s843 + $0x10] sm:$0xff]
  %v847 = vld [vmem:[%s843 + $0x18] sm:$0xff]
  %v848 = vld [vmem:[%s843 + $0x20] sm:$0xff]
  %v849 = vld [vmem:[%s843 + $0x28] sm:$0xff]
  %v850 = vld [vmem:[%s843 + $0x30] sm:$0xff]
  %v851 = vld [vmem:[%s843 + $0x38] sm:$0xff]
  %v852 = vld [vmem:[%s843 + $0x40] sm:$0xff]
  %v853 = vmul.f32 %v844, %v37
  %v854 = vmul.f32 %v845, %v37
  %v855 = vmul.f32 %v846, %v37
  %v856 = vmul.f32 %v847, %v37
  %v857 = vmul.f32 %v848, %v37
  %v858 = vmul.f32 %v849, %v37
  %v859 = vmul.f32 %v850, %v37
  %v860 = vmul.f32 %v851, %v37
  %v861 = vmul.f32 %v852, %v37
  %v862 = vadd.f32 %v853, %v52
  %v863 = vadd.f32 %v854, %v52
  %v864 = vadd.f32 %v855, %v52
  %v865 = vadd.f32 %v856, %v52
  %v866 = vadd.f32 %v857, %v52
  %v867 = vadd.f32 %v858, %v52
  %v868 = vadd.f32 %v859, %v52
  %v869 = vadd.f32 %v860, %v52
  %v870 = vadd.f32 %v861, %v52
  %v871 = vmax.f32 %v862, 0.0
  %v872 = vmax.f32 %v863, 0.0
  %v873 = vmax.f32 %v864, 0.0
  %v874 = vmax.f32 %v865, 0.0
  %v875 = vmax.f32 %v866, 0.0
  %v876 = vmax.f32 %v867, 0.0
  %v877 = vmax.f32 %v868, 0.0
  %v878 = vmax.f32 %v869, 0.0
  %v879 = vmax.f32 %v870, 0.0
  %s880 = scalar_lea.vmem %s2, 432
  %v881 = vld [vmem:[%s880] sm:$0xff]
  %v882 = vld [vmem:[%s880 + $0x8] sm:$0xff]
  %v883 = vld [vmem:[%s880 + $0x10] sm:$0xff]
  %v884 = vld [vmem:[%s880 + $0x18] sm:$0xff]
  %v885 = vld [vmem:[%s880 + $0x20] sm:$0xff]
  %v886 = vld [vmem:[%s880 + $0x28] sm:$0xff]
  %v887 = vld [vmem:[%s880 + $0x30] sm:$0xff]
  %v888 = vld [vmem:[%s880 + $0x38] sm:$0xff]
  %v889 = vld [vmem:[%s880 + $0x40] sm:$0xff]
  %891 = vset.pattern.permute.xlu0 0
  %892 = vperm.xlu0 %891, %v881
  %v893 = vpop.permute.xlu0 %892
  %896 = vset.pattern.permute.xlu0 0
  %897 = vperm.xlu0 %896, %v882
  %v898 = vpop.permute.xlu0 %897
  %901 = vset.pattern.permute.xlu0 0
  %902 = vperm.xlu0 %901, %v883
  %v903 = vpop.permute.xlu0 %902
  %906 = vset.pattern.permute.xlu0 0
  %907 = vperm.xlu0 %906, %v884
  %v908 = vpop.permute.xlu0 %907
  %911 = vset.pattern.permute.xlu0 0
  %912 = vperm.xlu0 %911, %v885
  %v913 = vpop.permute.xlu0 %912
  %916 = vset.pattern.permute.xlu0 0
  %917 = vperm.xlu0 %916, %v886
  %v918 = vpop.permute.xlu0 %917
  %921 = vset.pattern.permute.xlu0 0
  %922 = vperm.xlu0 %921, %v887
  %v923 = vpop.permute.xlu0 %922
  %926 = vset.pattern.permute.xlu0 0
  %927 = vperm.xlu0 %926, %v888
  %v928 = vpop.permute.xlu0 %927
  %931 = vset.pattern.permute.xlu0 0
  %932 = vperm.xlu0 %931, %v889
  %v933 = vpop.permute.xlu0 %932
  %v935 = vmul.f32 %v871, %v893
  %v936 = vmul.f32 %v872, %v898
  %v937 = vmul.f32 %v873, %v903
  %v938 = vmul.f32 %v874, %v908
  %v939 = vmul.f32 %v875, %v913
  %v940 = vmul.f32 %v876, %v918
  %v941 = vmul.f32 %v877, %v923
  %v942 = vmul.f32 %v878, %v928
  %v943 = vmul.f32 %v879, %v933
  %v944 = vmax.f32 %v806, %v935
  %v945 = vmax.f32 %v807, %v936
  %v946 = vmax.f32 %v808, %v937
  %v947 = vmax.f32 %v809, %v938
  %v948 = vmax.f32 %v810, %v939
  %v949 = vmax.f32 %v811, %v940
  %v950 = vmax.f32 %v812, %v941
  %v951 = vmax.f32 %v813, %v942
  %v952 = vmax.f32 %v814, %v943
  %s953 = scalar_lea.vmem %s1, 432
  %v954 = vld [vmem:[%s953] sm:$0xff]
  %v955 = vld [vmem:[%s953 + $0x8] sm:$0xff]
  %v956 = vld [vmem:[%s953 + $0x10] sm:$0xff]
  %v957 = vld [vmem:[%s953 + $0x18] sm:$0xff]
  %v958 = vld [vmem:[%s953 + $0x20] sm:$0xff]
  %v959 = vld [vmem:[%s953 + $0x28] sm:$0xff]
  %v960 = vld [vmem:[%s953 + $0x30] sm:$0xff]
  %v961 = vld [vmem:[%s953 + $0x38] sm:$0xff]
  %v962 = vld [vmem:[%s953 + $0x40] sm:$0xff]
  %v963 = vmax.f32 %v954, 0.0
  %v964 = vmax.f32 %v955, 0.0
  %v965 = vmax.f32 %v956, 0.0
  %v966 = vmax.f32 %v957, 0.0
  %v967 = vmax.f32 %v958, 0.0
  %v968 = vmax.f32 %v959, 0.0
  %v969 = vmax.f32 %v960, 0.0
  %v970 = vmax.f32 %v961, 0.0
  %v971 = vmax.f32 %v962, 0.0
  %v972 = vmax.f32 %v834, %v963
  %v973 = vmax.f32 %v835, %v964
  %v974 = vmax.f32 %v836, %v965
  %v975 = vmax.f32 %v837, %v966
  %v976 = vmax.f32 %v838, %v967
  %v977 = vmax.f32 %v839, %v968
  %v978 = vmax.f32 %v840, %v969
  %v979 = vmax.f32 %v841, %v970
  %v980 = vmax.f32 %v842, %v971
  %s981 = scalar_lea.vmem %s0, 504
  %v982 = vld [vmem:[%s981] sm:$0xff]
  %v983 = vld [vmem:[%s981 + $0x8] sm:$0xff]
  %v984 = vld [vmem:[%s981 + $0x10] sm:$0xff]
  %v985 = vld [vmem:[%s981 + $0x18] sm:$0xff]
  %v986 = vld [vmem:[%s981 + $0x20] sm:$0xff]
  %v987 = vld [vmem:[%s981 + $0x28] sm:$0xff]
  %v988 = vld [vmem:[%s981 + $0x30] sm:$0xff]
  %v989 = vld [vmem:[%s981 + $0x38] sm:$0xff]
  %v990 = vld [vmem:[%s981 + $0x40] sm:$0xff]
  %v991 = vmul.f32 %v982, %v37
  %v992 = vmul.f32 %v983, %v37
  %v993 = vmul.f32 %v984, %v37
  %v994 = vmul.f32 %v985, %v37
  %v995 = vmul.f32 %v986, %v37
  %v996 = vmul.f32 %v987, %v37
  %v997 = vmul.f32 %v988, %v37
  %v998 = vmul.f32 %v989, %v37
  %v999 = vmul.f32 %v990, %v37
  %v1000 = vadd.f32 %v991, %v52
  %v1001 = vadd.f32 %v992, %v52
  %v1002 = vadd.f32 %v993, %v52
  %v1003 = vadd.f32 %v994, %v52
  %v1004 = vadd.f32 %v995, %v52
  %v1005 = vadd.f32 %v996, %v52
  %v1006 = vadd.f32 %v997, %v52
  %v1007 = vadd.f32 %v998, %v52
  %v1008 = vadd.f32 %v999, %v52
  %v1009 = vmax.f32 %v1000, 0.0
  %v1010 = vmax.f32 %v1001, 0.0
  %v1011 = vmax.f32 %v1002, 0.0
  %v1012 = vmax.f32 %v1003, 0.0
  %v1013 = vmax.f32 %v1004, 0.0
  %v1014 = vmax.f32 %v1005, 0.0
  %v1015 = vmax.f32 %v1006, 0.0
  %v1016 = vmax.f32 %v1007, 0.0
  %v1017 = vmax.f32 %v1008, 0.0
  %s1018 = scalar_lea.vmem %s2, 504
  %v1019 = vld [vmem:[%s1018] sm:$0xff]
  %v1020 = vld [vmem:[%s1018 + $0x8] sm:$0xff]
  %v1021 = vld [vmem:[%s1018 + $0x10] sm:$0xff]
  %v1022 = vld [vmem:[%s1018 + $0x18] sm:$0xff]
  %v1023 = vld [vmem:[%s1018 + $0x20] sm:$0xff]
  %v1024 = vld [vmem:[%s1018 + $0x28] sm:$0xff]
  %v1025 = vld [vmem:[%s1018 + $0x30] sm:$0xff]
  %v1026 = vld [vmem:[%s1018 + $0x38] sm:$0xff]
  %v1027 = vld [vmem:[%s1018 + $0x40] sm:$0xff]
  %1029 = vset.pattern.permute.xlu0 0
  %1030 = vperm.xlu0 %1029, %v1019
  %v1031 = vpop.permute.xlu0 %1030
  %1034 = vset.pattern.permute.xlu0 0
  %1035 = vperm.xlu0 %1034, %v1020
  %v1036 = vpop.permute.xlu0 %1035
  %1039 = vset.pattern.permute.xlu0 0
  %1040 = vperm.xlu0 %1039, %v1021
  %v1041 = vpop.permute.xlu0 %1040
  %1044 = vset.pattern.permute.xlu0 0
  %1045 = vperm.xlu0 %1044, %v1022
  %v1046 = vpop.permute.xlu0 %1045
  %1049 = vset.pattern.permute.xlu0 0
  %1050 = vperm.xlu0 %1049, %v1023
  %v1051 = vpop.permute.xlu0 %1050
  %1054 = vset.pattern.permute.xlu0 0
  %1055 = vperm.xlu0 %1054, %v1024
  %v1056 = vpop.permute.xlu0 %1055
  %1059 = vset.pattern.permute.xlu0 0
  %1060 = vperm.xlu0 %1059, %v1025
  %v1061 = vpop.permute.xlu0 %1060
  %1064 = vset.pattern.permute.xlu0 0
  %1065 = vperm.xlu0 %1064, %v1026
  %v1066 = vpop.permute.xlu0 %1065
  %1069 = vset.pattern.permute.xlu0 0
  %1070 = vperm.xlu0 %1069, %v1027
  %v1071 = vpop.permute.xlu0 %1070
  %v1073 = vmul.f32 %v1009, %v1031
  %v1074 = vmul.f32 %v1010, %v1036
  %v1075 = vmul.f32 %v1011, %v1041
  %v1076 = vmul.f32 %v1012, %v1046
  %v1077 = vmul.f32 %v1013, %v1051
  %v1078 = vmul.f32 %v1014, %v1056
  %v1079 = vmul.f32 %v1015, %v1061
  %v1080 = vmul.f32 %v1016, %v1066
  %v1081 = vmul.f32 %v1017, %v1071
  %v1082 = vmax.f32 %v944, %v1073
  %v1083 = vmax.f32 %v945, %v1074
  %v1084 = vmax.f32 %v946, %v1075
  %v1085 = vmax.f32 %v947, %v1076
  %v1086 = vmax.f32 %v948, %v1077
  %v1087 = vmax.f32 %v949, %v1078
  %v1088 = vmax.f32 %v950, %v1079
  %v1089 = vmax.f32 %v951, %v1080
  %v1090 = vmax.f32 %v952, %v1081
  %s1091 = scalar_lea.vmem %s1, 504
  %v1092 = vld [vmem:[%s1091] sm:$0xff]
  %v1093 = vld [vmem:[%s1091 + $0x8] sm:$0xff]
  %v1094 = vld [vmem:[%s1091 + $0x10] sm:$0xff]
  %v1095 = vld [vmem:[%s1091 + $0x18] sm:$0xff]
  %v1096 = vld [vmem:[%s1091 + $0x20] sm:$0xff]
  %v1097 = vld [vmem:[%s1091 + $0x28] sm:$0xff]
  %v1098 = vld [vmem:[%s1091 + $0x30] sm:$0xff]
  %v1099 = vld [vmem:[%s1091 + $0x38] sm:$0xff]
  %v1100 = vld [vmem:[%s1091 + $0x40] sm:$0xff]
  %v1101 = vmax.f32 %v1092, 0.0
  %v1102 = vmax.f32 %v1093, 0.0
  %v1103 = vmax.f32 %v1094, 0.0
  %v1104 = vmax.f32 %v1095, 0.0
  %v1105 = vmax.f32 %v1096, 0.0
  %v1106 = vmax.f32 %v1097, 0.0
  %v1107 = vmax.f32 %v1098, 0.0
  %v1108 = vmax.f32 %v1099, 0.0
  %v1109 = vmax.f32 %v1100, 0.0
  %v1110 = vmax.f32 %v972, %v1101
  %v1111 = vmax.f32 %v973, %v1102
  %v1112 = vmax.f32 %v974, %v1103
  %v1113 = vmax.f32 %v975, %v1104
  %v1114 = vmax.f32 %v976, %v1105
  %v1115 = vmax.f32 %v977, %v1106
  %v1116 = vmax.f32 %v978, %v1107
  %v1117 = vmax.f32 %v979, %v1108
  %v1118 = vmax.f32 %v980, %v1109
  %s1119 = scalar_lea.vmem %s0, 576
  %v1120 = vld [vmem:[%s1119] sm:$0xff]
  %v1121 = vld [vmem:[%s1119 + $0x8] sm:$0xff]
  %v1122 = vld [vmem:[%s1119 + $0x10] sm:$0xff]
  %v1123 = vld [vmem:[%s1119 + $0x18] sm:$0xff]
  %v1124 = vld [vmem:[%s1119 + $0x20] sm:$0xff]
  %v1125 = vld [vmem:[%s1119 + $0x28] sm:$0xff]
  %v1126 = vld [vmem:[%s1119 + $0x30] sm:$0xff]
  %v1127 = vld [vmem:[%s1119 + $0x38] sm:$0xff]
  %v1128 = vld [vmem:[%s1119 + $0x40] sm:$0xff]
  %v1129 = vmul.f32 %v1120, %v37
  %v1130 = vmul.f32 %v1121, %v37
  %v1131 = vmul.f32 %v1122, %v37
  %v1132 = vmul.f32 %v1123, %v37
  %v1133 = vmul.f32 %v1124, %v37
  %v1134 = vmul.f32 %v1125, %v37
  %v1135 = vmul.f32 %v1126, %v37
  %v1136 = vmul.f32 %v1127, %v37
  %v1137 = vmul.f32 %v1128, %v37
  %v1138 = vadd.f32 %v1129, %v52
  %v1139 = vadd.f32 %v1130, %v52
  %v1140 = vadd.f32 %v1131, %v52
  %v1141 = vadd.f32 %v1132, %v52
  %v1142 = vadd.f32 %v1133, %v52
  %v1143 = vadd.f32 %v1134, %v52
  %v1144 = vadd.f32 %v1135, %v52
  %v1145 = vadd.f32 %v1136, %v52
  %v1146 = vadd.f32 %v1137, %v52
  %v1147 = vmax.f32 %v1138, 0.0
  %v1148 = vmax.f32 %v1139, 0.0
  %v1149 = vmax.f32 %v1140, 0.0
  %v1150 = vmax.f32 %v1141, 0.0
  %v1151 = vmax.f32 %v1142, 0.0
  %v1152 = vmax.f32 %v1143, 0.0
  %v1153 = vmax.f32 %v1144, 0.0
  %v1154 = vmax.f32 %v1145, 0.0
  %v1155 = vmax.f32 %v1146, 0.0
  %s1156 = scalar_lea.vmem %s2, 576
  %v1157 = vld [vmem:[%s1156] sm:$0xff]
  %v1158 = vld [vmem:[%s1156 + $0x8] sm:$0xff]
  %v1159 = vld [vmem:[%s1156 + $0x10] sm:$0xff]
  %v1160 = vld [vmem:[%s1156 + $0x18] sm:$0xff]
  %v1161 = vld [vmem:[%s1156 + $0x20] sm:$0xff]
  %v1162 = vld [vmem:[%s1156 + $0x28] sm:$0xff]
  %v1163 = vld [vmem:[%s1156 + $0x30] sm:$0xff]
  %v1164 = vld [vmem:[%s1156 + $0x38] sm:$0xff]
  %v1165 = vld [vmem:[%s1156 + $0x40] sm:$0xff]
  %1167 = vset.pattern.permute.xlu0 0
  %1168 = vperm.xlu0 %1167, %v1157
  %v1169 = vpop.permute.xlu0 %1168
  %1172 = vset.pattern.permute.xlu0 0
  %1173 = vperm.xlu0 %1172, %v1158
  %v1174 = vpop.permute.xlu0 %1173
  %1177 = vset.pattern.permute.xlu0 0
  %1178 = vperm.xlu0 %1177, %v1159
  %v1179 = vpop.permute.xlu0 %1178
  %1182 = vset.pattern.permute.xlu0 0
  %1183 = vperm.xlu0 %1182, %v1160
  %v1184 = vpop.permute.xlu0 %1183
  %1187 = vset.pattern.permute.xlu0 0
  %1188 = vperm.xlu0 %1187, %v1161
  %v1189 = vpop.permute.xlu0 %1188
  %1192 = vset.pattern.permute.xlu0 0
  %1193 = vperm.xlu0 %1192, %v1162
  %v1194 = vpop.permute.xlu0 %1193
  %1197 = vset.pattern.permute.xlu0 0
  %1198 = vperm.xlu0 %1197, %v1163
  %v1199 = vpop.permute.xlu0 %1198
  %1202 = vset.pattern.permute.xlu0 0
  %1203 = vperm.xlu0 %1202, %v1164
  %v1204 = vpop.permute.xlu0 %1203
  %1207 = vset.pattern.permute.xlu0 0
  %1208 = vperm.xlu0 %1207, %v1165
  %v1209 = vpop.permute.xlu0 %1208
  %v1211 = vmul.f32 %v1147, %v1169
  %v1212 = vmul.f32 %v1148, %v1174
  %v1213 = vmul.f32 %v1149, %v1179
  %v1214 = vmul.f32 %v1150, %v1184
  %v1215 = vmul.f32 %v1151, %v1189
  %v1216 = vmul.f32 %v1152, %v1194
  %v1217 = vmul.f32 %v1153, %v1199
  %v1218 = vmul.f32 %v1154, %v1204
  %v1219 = vmul.f32 %v1155, %v1209
  %v1220 = vmax.f32 %v1082, %v1211
  %v1221 = vmax.f32 %v1083, %v1212
  %v1222 = vmax.f32 %v1084, %v1213
  %v1223 = vmax.f32 %v1085, %v1214
  %v1224 = vmax.f32 %v1086, %v1215
  %v1225 = vmax.f32 %v1087, %v1216
  %v1226 = vmax.f32 %v1088, %v1217
  %v1227 = vmax.f32 %v1089, %v1218
  %v1228 = vmax.f32 %v1090, %v1219
  %s1229 = scalar_lea.vmem %s1, 576
  %v1230 = vld [vmem:[%s1229] sm:$0xff]
  %v1231 = vld [vmem:[%s1229 + $0x8] sm:$0xff]
  %v1232 = vld [vmem:[%s1229 + $0x10] sm:$0xff]
  %v1233 = vld [vmem:[%s1229 + $0x18] sm:$0xff]
  %v1234 = vld [vmem:[%s1229 + $0x20] sm:$0xff]
  %v1235 = vld [vmem:[%s1229 + $0x28] sm:$0xff]
  %v1236 = vld [vmem:[%s1229 + $0x30] sm:$0xff]
  %v1237 = vld [vmem:[%s1229 + $0x38] sm:$0xff]
  %v1238 = vld [vmem:[%s1229 + $0x40] sm:$0xff]
  %v1239 = vmax.f32 %v1230, 0.0
  %v1240 = vmax.f32 %v1231, 0.0
  %v1241 = vmax.f32 %v1232, 0.0
  %v1242 = vmax.f32 %v1233, 0.0
  %v1243 = vmax.f32 %v1234, 0.0
  %v1244 = vmax.f32 %v1235, 0.0
  %v1245 = vmax.f32 %v1236, 0.0
  %v1246 = vmax.f32 %v1237, 0.0
  %v1247 = vmax.f32 %v1238, 0.0
  %v1248 = vmax.f32 %v1110, %v1239
  %v1249 = vmax.f32 %v1111, %v1240
  %v1250 = vmax.f32 %v1112, %v1241
  %v1251 = vmax.f32 %v1113, %v1242
  %v1252 = vmax.f32 %v1114, %v1243
  %v1253 = vmax.f32 %v1115, %v1244
  %v1254 = vmax.f32 %v1116, %v1245
  %v1255 = vmax.f32 %v1117, %v1246
  %v1256 = vmax.f32 %v1118, %v1247
  %vm1257 = vcmask 31744
  %1258 = vst.msk [vmem:[%s5] sm:$0xff] %vm1257, %v1220
  %1259 = vst.msk [vmem:[%s5 + $0x8] sm:$0xff] %vm1257, %v1221
  %1260 = vst.msk [vmem:[%s5 + $0x10] sm:$0xff] %vm1257, %v1222
  %1261 = vst.msk [vmem:[%s5 + $0x18] sm:$0xff] %vm1257, %v1223
  %1262 = vst.msk [vmem:[%s5 + $0x20] sm:$0xff] %vm1257, %v1224
  %1263 = vst.msk [vmem:[%s5 + $0x28] sm:$0xff] %vm1257, %v1225
  %1264 = vst.msk [vmem:[%s5 + $0x30] sm:$0xff] %vm1257, %v1226
  %1265 = vst.msk [vmem:[%s5 + $0x38] sm:$0xff] %vm1257, %v1227
  %1266 = vst.msk [vmem:[%s5 + $0x40] sm:$0xff] %vm1257, %v1228
  %1267 = vst.msk [vmem:[%s6] sm:$0xff] %vm1257, %v1248
  %1268 = vst.msk [vmem:[%s6 + $0x8] sm:$0xff] %vm1257, %v1249
  %1269 = vst.msk [vmem:[%s6 + $0x10] sm:$0xff] %vm1257, %v1250
  %1270 = vst.msk [vmem:[%s6 + $0x18] sm:$0xff] %vm1257, %v1251
  %1271 = vst.msk [vmem:[%s6 + $0x20] sm:$0xff] %vm1257, %v1252
  %1272 = vst.msk [vmem:[%s6 + $0x28] sm:$0xff] %vm1257, %v1253
  %1273 = vst.msk [vmem:[%s6 + $0x30] sm:$0xff] %vm1257, %v1254
  %1274 = vst.msk [vmem:[%s6 + $0x38] sm:$0xff] %vm1257, %v1255
  %1275 = vst.msk [vmem:[%s6 + $0x40] sm:$0xff] %vm1257, %v1256
  // Predicated region
  $region22: #{residual_block_forward.5} parent=0 // pred_check
    _
  $region23: #{residual_block_forward.5} parent=0 // pred_check_branch
    %1277 = sbr.rel (0) target = $region25
  $region24: #{residual_block_forward.5} parent=0 // pred_region
    _
  $region25: #{residual_block_forward.5} parent=0 // pred_fallthru
    _
  // Predicated region
  $region26: #{residual_block_forward.5} parent=0 // pred_check
    _
  $region27: #{residual_block_forward.5} parent=0 // pred_check_branch
    %1279 = sbr.rel (0) target = $region29
  $region28: #{residual_block_forward.5} parent=0 // pred_region
    _
  $region29: #{residual_block_forward.5} parent=0 // pred_fallthru
    _
  // Predicated region
  $region30: #{residual_block_forward.5} parent=0 // pred_check
    _
  $region31: #{residual_block_forward.5} parent=0 // pred_check_branch
    %1281 = sbr.rel (0) target = $region33
  $region32: #{residual_block_forward.5} parent=0 // pred_region
    _
  $region33: #{residual_block_forward.5} parent=0 // pred_fallthru
    _
  // Predicated region
  $region34: #{residual_block_forward.5} parent=0 // pred_check
    _
  $region35: #{residual_block_forward.5} parent=0 // pred_check_branch
    %1283 = sbr.rel (0) target = $region37
  $region36: #{residual_block_forward.5} parent=0 // pred_region
    _
  $region37: #{residual_block_forward.5} parent=0 // pred_fallthru
    _

</llo_original>
